<compile_context>
chip_gen: v7x
topology: tpu7x:2x2x1
jax: 0.10.0
libtpu: 0.0.40
codegen_flags: <defaults>
</compile_context>

<pallas_src>
import functools

import jax
import jax.numpy as jnp
from jax.experimental import pallas as pl
from jax.experimental.pallas import tpu as pltpu

EPS = 1e-5


def _bn_convt_sigmoid_kernel(x_ref, gamma_ref, beta_ref, w_ref, bias_ref,
                             out_ref, xstk_ref, *, H, W):
    # Hard-wired to kernel=3x3, stride=(1,2), padding=(2,1) of the module.
    HW = H * W
    H_OUT = H - 2                 # (H-1)*1 - 2*2 + 3
    N = H_OUT * W                 # flattened (y, j) extent of the even/odd halves
    C = x_ref.shape[0]            # channels live on sublanes

    # ---- BatchNorm2d statistics (training mode, biased variance), ONE pass ----
    x = x_ref[...]                                   # (C, HW + pad)
    xr = x[:, :HW]                                   # real spatial columns only
    s1 = jnp.sum(xr, axis=1, keepdims=True)          # (C, 1)
    s2 = jnp.sum(xr * xr, axis=1, keepdims=True)     # (C, 1)
    mean = s1 * (1.0 / HW)
    var = s2 * (1.0 / HW) - mean * mean
    inv = jax.lax.rsqrt(var + EPS)
    scale = gamma_ref[...] * inv                     # (C, 1)
    shift = beta_ref[...] - mean * scale             # (C, 1)
    xn = x * scale + shift                           # (C, HW + pad)  lane-broadcast

    # ---- Stage the 6 shifted windows as one stacked contraction operand ----
    # slice s in {0,1,2}: "base"  window, ih = y + 2 - s,     iw = j     (kw=1 / kw=2)
    # slice s in {3,4,5}: "shift" window, ih = y + 2 - (s-3), iw = j + 1 (kw=0)
    # Each (C, N) window sits at an 8-aligned sublane offset; unused rows are zero
    # (the matching stacked-weight columns are zero too).  The lone padded column
    # only ever feeds the discarded j = W-1 odd output column.
    xstk_ref[...] = jnp.zeros_like(xstk_ref)
    for s in range(3):
        off = (2 - s) * W
        xstk_ref[8 * s:8 * s + C, :] = xn[:, off:off + N]
    for s in range(3):
        off = (2 - s) * W + 1
        xstk_ref[8 * (3 + s):8 * (3 + s) + C, :] = xn[:, off:off + N]

    # ---- One fused MXU matmul for all 9 conv-transpose taps, + bias + sigmoid ----
    res = jnp.dot(w_ref[...], xstk_ref[...],
                  preferred_element_type=jnp.float32)          # (2C, N)
    out_ref[...] = jax.nn.sigmoid(res + bias_ref[...])


@jax.jit
def model_forward(x, gamma, beta, w, bias):
    """x: (1, C, H, W) NCHW float32; w: (C_in, C_out, 3, 3) (PyTorch ConvTranspose2d)."""
    Nb, C, H, W = x.shape
    assert Nb == 1 and C <= 8
    H_OUT = H - 2
    W_OUT = (W - 1) * 2 - 2 + 3
    N = H_OUT * W
    HW = H * W
    LPAD = 128                                      # >= 1 extra column for the shift windows

    # Channels on sublanes, spatial on lanes: free reshape of the NCHW input.
    x2d = x[0].reshape(C, HW).astype(jnp.float32)
    x2d = jnp.pad(x2d, ((0, 0), (0, LPAD)))

    # Stacked weight (2C, 48): rows 0..C-1 -> even output cols, rows C..2C-1 -> odd.
    # Contraction column 8*s + c pairs with staged slice s, input channel c.
    wm = w.astype(jnp.float32)                      # (C_in, C_out, 3, 3)
    w_stk = jnp.zeros((2 * C, 6 * 8), jnp.float32)
    for s in range(3):
        w_stk = w_stk.at[0:C, 8 * s:8 * s + C].set(wm[:, :, s, 1].T)                   # even, kw=1
        w_stk = w_stk.at[C:2 * C, 8 * s:8 * s + C].set(wm[:, :, s, 2].T)               # odd,  kw=2
        w_stk = w_stk.at[C:2 * C, 8 * (3 + s):8 * (3 + s) + C].set(wm[:, :, s, 0].T)   # odd,  kw=0

    g2 = gamma.reshape(C, 1).astype(jnp.float32)
    b2 = beta.reshape(C, 1).astype(jnp.float32)
    bias2 = jnp.concatenate([bias, bias]).reshape(2 * C, 1).astype(jnp.float32)

    kernel = functools.partial(_bn_convt_sigmoid_kernel, H=H, W=W)
    out2d = pl.pallas_call(
        kernel,
        out_shape=jax.ShapeDtypeStruct((2 * C, N), jnp.float32),
        scratch_shapes=[pltpu.VMEM((6 * 8, N), jnp.float32)],
    )(x2d, g2, b2, w_stk, bias2)

    # Interleave even/odd output columns; channels already lead -> no final transpose.
    even = out2d[:C].reshape(C, H_OUT, W)
    odd = out2d[C:].reshape(C, H_OUT, W)
    out = jnp.stack([even, odd], axis=-1).reshape(C, H_OUT, 2 * W)[:, :, :W_OUT]
    return out[None]                                # (1, C, H_OUT, W_OUT)


def reference_forward(x, gamma, beta, w, bias):
    """Plain-JAX reference (BN train-mode + ConvTranspose2d via lhs-dilated conv)."""
    m = jnp.mean(x, axis=(0, 2, 3), keepdims=True)
    v = jnp.mean((x - m) ** 2, axis=(0, 2, 3), keepdims=True)
    xn = (x - m) * jax.lax.rsqrt(v + EPS) * gamma.reshape(1, -1, 1, 1) \
        + beta.reshape(1, -1, 1, 1)
    w_conv = jnp.transpose(w[:, :, ::-1, ::-1], (1, 0, 2, 3))   # (O, I, kh, kw), flipped
    out = jax.lax.conv_general_dilated(
        xn, w_conv, window_strides=(1, 1),
        padding=((0, 0), (1, 1)),          # (k-1-p_h, k-1-p_h), (k-1-p_w, k-1-p_w)
        lhs_dilation=(1, 2), rhs_dilation=(1, 1),
        dimension_numbers=("NCHW", "OIHW", "NCHW"),
        precision=jax.lax.Precision.HIGHEST)
    return jax.nn.sigmoid(out + bias.reshape(1, -1, 1, 1))


if __name__ == "__main__":
    key = jax.random.PRNGKey(0)
    kx, kw, kb = jax.random.split(key, 3)
    C, H, W = 6, 32, 32

    x = jax.random.normal(kx, (1, C, H, W), jnp.float32)
    # BatchNorm2d default init: weight=1, bias=0
    gamma = jnp.ones((C,), jnp.float32)
    beta = jnp.zeros((C,), jnp.float32)
    # ConvTranspose2d params (deterministic uniform init, PyTorch-like bound)
    bound = 1.0 / (C * 3 * 3) ** 0.5
    w = jax.random.uniform(kw, (C, C, 3, 3), jnp.float32, -bound, bound)
    bias = jax.random.uniform(kb, (C,), jnp.float32, -bound, bound)

    out = jax.block_until_ready(model_forward(x, gamma, beta, w, bias))
    assert out.shape == (1, C, 30, 63), out.shape

    ref = reference_forward(x, gamma, beta, w, bias)
    err = float(jnp.max(jnp.abs(out - ref)))
    assert err < 2e-2, f"max abs err {err}"

    print("KERNEL_OK")
</pallas_src>

<mosaic_0001>
module attributes {stable_mosaic.version = 11 : i64} {
  func.func @_bn_convt_sigmoid_kernel(%arg0: memref<6x1152xf32, #tpu.memory_space<vmem>>, %arg1: memref<6x1xf32, #tpu.memory_space<vmem>>, %arg2: memref<6x1xf32, #tpu.memory_space<vmem>>, %arg3: memref<12x48xf32, #tpu.memory_space<vmem>>, %arg4: memref<12x1xf32, #tpu.memory_space<vmem>>, %arg5: memref<12x960xf32, #tpu.memory_space<vmem>>, %arg6: memref<48x960xf32, #tpu.memory_space<vmem>>) attributes {dimension_semantics = [], scalar_prefetch = 0 : i64, scratch_operands = 1 : i64, tpu.core_type = #tpu.core_type<tc>} {
    %c0 = arith.constant 0 : index
    %c0_0 = arith.constant 0 : index
    %0 = vector.load %arg0[%c0, %c0_0] : memref<6x1152xf32, #tpu.memory_space<vmem>>, vector<6x1152xf32>
    %1 = vector.extract_strided_slice %0 {offsets = [0, 0], sizes = [6, 1024], strides = [1, 1]} : vector<6x1152xf32> to vector<6x1024xf32>
    %cst = arith.constant dense<0.000000e+00> : vector<6xf32>
    %2 = vector.multi_reduction <add>, %1, %cst [1] : vector<6x1024xf32> to vector<6xf32>
    %3 = vector.shape_cast %2 : vector<6xf32> to vector<6x1xf32>
    %4 = arith.mulf %1, %1 : vector<6x1024xf32>
    %cst_1 = arith.constant dense<0.000000e+00> : vector<6xf32>
    %5 = vector.multi_reduction <add>, %4, %cst_1 [1] : vector<6x1024xf32> to vector<6xf32>
    %6 = vector.shape_cast %5 : vector<6xf32> to vector<6x1xf32>
    %cst_2 = arith.constant 9.765625E-4 : f32
    %7 = vector.broadcast %cst_2 : f32 to vector<6x1xf32>
    %8 = arith.mulf %3, %7 : vector<6x1xf32>
    %cst_3 = arith.constant 9.765625E-4 : f32
    %9 = vector.broadcast %cst_3 : f32 to vector<6x1xf32>
    %10 = arith.mulf %6, %9 : vector<6x1xf32>
    %11 = arith.mulf %8, %8 : vector<6x1xf32>
    %12 = arith.subf %10, %11 : vector<6x1xf32>
    %cst_4 = arith.constant 9.99999974E-6 : f32
    %13 = vector.broadcast %cst_4 : f32 to vector<6x1xf32>
    %14 = arith.addf %12, %13 : vector<6x1xf32>
    %15 = math.rsqrt %14 : vector<6x1xf32>
    %c0_5 = arith.constant 0 : index
    %c0_6 = arith.constant 0 : index
    %16 = vector.load %arg1[%c0_5, %c0_6] : memref<6x1xf32, #tpu.memory_space<vmem>>, vector<6x1xf32>
    %17 = arith.mulf %16, %15 : vector<6x1xf32>
    %c0_7 = arith.constant 0 : index
    %c0_8 = arith.constant 0 : index
    %18 = vector.load %arg2[%c0_7, %c0_8] : memref<6x1xf32, #tpu.memory_space<vmem>>, vector<6x1xf32>
    %19 = arith.mulf %8, %17 : vector<6x1xf32>
    %20 = arith.subf %18, %19 : vector<6x1xf32>
    %21 = vector.broadcast %17 : vector<6x1xf32> to vector<6x1152xf32>
    %22 = arith.mulf %0, %21 : vector<6x1152xf32>
    %23 = vector.broadcast %20 : vector<6x1xf32> to vector<6x1152xf32>
    %24 = arith.addf %22, %23 : vector<6x1152xf32>
    %cst_9 = arith.constant 0.000000e+00 : f32
    %25 = vector.broadcast %cst_9 : f32 to vector<48x960xf32>
    %c0_10 = arith.constant 0 : index
    %c0_11 = arith.constant 0 : index
    %26 = vector.load %arg6[%c0_10, %c0_11] : memref<48x960xf32, #tpu.memory_space<vmem>>, vector<48x960xf32>
    tpu.vector_store %arg6[%c0_10, %c0_11], %25 {strides = array<i32>} : memref<48x960xf32, #tpu.memory_space<vmem>>, vector<48x960xf32>,
    %27 = vector.extract_strided_slice %24 {offsets = [0, 64], sizes = [6, 960], strides = [1, 1]} : vector<6x1152xf32> to vector<6x960xf32>
    %c0_12 = arith.constant 0 : index
    %c0_13 = arith.constant 0 : index
    %28 = vector.load %arg6[%c0_12, %c0_13] : memref<48x960xf32, #tpu.memory_space<vmem>>, vector<6x960xf32>
    tpu.vector_store %arg6[%c0_12, %c0_13], %27 {strides = array<i32>} : memref<48x960xf32, #tpu.memory_space<vmem>>, vector<6x960xf32>,
    %29 = vector.extract_strided_slice %24 {offsets = [0, 32], sizes = [6, 960], strides = [1, 1]} : vector<6x1152xf32> to vector<6x960xf32>
    %c8 = arith.constant 8 : index
    %c0_14 = arith.constant 0 : index
    %30 = vector.load %arg6[%c8, %c0_14] : memref<48x960xf32, #tpu.memory_space<vmem>>, vector<6x960xf32>
    tpu.vector_store %arg6[%c8, %c0_14], %29 {strides = array<i32>} : memref<48x960xf32, #tpu.memory_space<vmem>>, vector<6x960xf32>,
    %31 = vector.extract_strided_slice %24 {offsets = [0, 0], sizes = [6, 960], strides = [1, 1]} : vector<6x1152xf32> to vector<6x960xf32>
    %c16 = arith.constant 16 : index
    %c0_15 = arith.constant 0 : index
    %32 = vector.load %arg6[%c16, %c0_15] : memref<48x960xf32, #tpu.memory_space<vmem>>, vector<6x960xf32>
    tpu.vector_store %arg6[%c16, %c0_15], %31 {strides = array<i32>} : memref<48x960xf32, #tpu.memory_space<vmem>>, vector<6x960xf32>,
    %33 = vector.extract_strided_slice %24 {offsets = [0, 65], sizes = [6, 960], strides = [1, 1]} : vector<6x1152xf32> to vector<6x960xf32>
    %c24 = arith.constant 24 : index
    %c0_16 = arith.constant 0 : index
    %34 = vector.load %arg6[%c24, %c0_16] : memref<48x960xf32, #tpu.memory_space<vmem>>, vector<6x960xf32>
    tpu.vector_store %arg6[%c24, %c0_16], %33 {strides = array<i32>} : memref<48x960xf32, #tpu.memory_space<vmem>>, vector<6x960xf32>,
    %35 = vector.extract_strided_slice %24 {offsets = [0, 33], sizes = [6, 960], strides = [1, 1]} : vector<6x1152xf32> to vector<6x960xf32>
    %c32 = arith.constant 32 : index
    %c0_17 = arith.constant 0 : index
    %36 = vector.load %arg6[%c32, %c0_17] : memref<48x960xf32, #tpu.memory_space<vmem>>, vector<6x960xf32>
    tpu.vector_store %arg6[%c32, %c0_17], %35 {strides = array<i32>} : memref<48x960xf32, #tpu.memory_space<vmem>>, vector<6x960xf32>,
    %37 = vector.extract_strided_slice %24 {offsets = [0, 1], sizes = [6, 960], strides = [1, 1]} : vector<6x1152xf32> to vector<6x960xf32>
    %c40 = arith.constant 40 : index
    %c0_18 = arith.constant 0 : index
    %38 = vector.load %arg6[%c40, %c0_18] : memref<48x960xf32, #tpu.memory_space<vmem>>, vector<6x960xf32>
    tpu.vector_store %arg6[%c40, %c0_18], %37 {strides = array<i32>} : memref<48x960xf32, #tpu.memory_space<vmem>>, vector<6x960xf32>,
    %c0_19 = arith.constant 0 : index
    %c0_20 = arith.constant 0 : index
    %39 = vector.load %arg3[%c0_19, %c0_20] : memref<12x48xf32, #tpu.memory_space<vmem>>, vector<12x48xf32>
    %c0_21 = arith.constant 0 : index
    %c0_22 = arith.constant 0 : index
    %40 = vector.load %arg6[%c0_21, %c0_22] : memref<48x960xf32, #tpu.memory_space<vmem>>, vector<48x960xf32>
    %cst_23 = arith.constant dense<0.000000e+00> : vector<12x960xf32>
    %41 = tpu.matmul %39, %40, %cst_23 {dimension_numbers = #tpu.dot_dimension_numbers<[1], [0], [0], [1], [0, 0, 1, 1], [], []>} : vector<12x48xf32>, vector<48x960xf32>, vector<12x960xf32> -> vector<12x960xf32>
    %c0_24 = arith.constant 0 : index
    %c0_25 = arith.constant 0 : index
    %42 = vector.load %arg4[%c0_24, %c0_25] : memref<12x1xf32, #tpu.memory_space<vmem>>, vector<12x1xf32>
    %43 = vector.broadcast %42 : vector<12x1xf32> to vector<12x960xf32>
    %44 = arith.addf %41, %43 : vector<12x960xf32>
    %45 = arith.negf %44 : vector<12x960xf32>
    %46 = math.exp %45 : vector<12x960xf32>
    %cst_26 = arith.constant 1.000000e+00 : f32
    %47 = vector.broadcast %cst_26 : f32 to vector<12x960xf32>
    %48 = arith.addf %47, %46 : vector<12x960xf32>
    %49 = arith.divf %47, %48 : vector<12x960xf32>
    %c0_27 = arith.constant 0 : index
    %c0_28 = arith.constant 0 : index
    %50 = vector.load %arg5[%c0_27, %c0_28] : memref<12x960xf32, #tpu.memory_space<vmem>>, vector<12x960xf32>
    tpu.vector_store %arg5[%c0_27, %c0_28], %49 {strides = array<i32>} : memref<12x960xf32, #tpu.memory_space<vmem>>, vector<12x960xf32>,
    return
  }
}

</mosaic_0001>

<llo_original>
// kernel: squeeze.10
$region0: #{squeeze.10}
  %s0 = inlined_call_operand.vmem [shape: f32[1,6,32,32], index: 0, kind: input, shape index: {}]
  %s1 = inlined_call_operand.vmem [shape: f32[6,1024], index: 1, kind: output, shape index: {}]
  %v2 = vld [vmem:[%s0] ss:$4 sm:$0xff]
  %vm3 = vcmask 261120
  %4 = vst.msk [vmem:[%s1] ss:$8 sm:$0xf] %vm3, %v2
  %5 = vst.msk [vmem:[%s1] ss:$8 sm:$0xf0] %vm3, %v2
  %s6 = scalar_lea.vmem %s0, 32
  %v7 = vld [vmem:[%s6] ss:$4 sm:$0xff]
  %vm8 = vcmask 261120
  %s9 = scalar_lea.vmem %s1, 1
  %10 = vst.msk [vmem:[%s9] ss:$8 sm:$0xf] %vm8, %v7
  %s11 = scalar_lea.vmem %s1, 1
  %12 = vst.msk [vmem:[%s11] ss:$8 sm:$0xf0] %vm8, %v7
  %s13 = scalar_lea.vmem %s0, 64
  %v14 = vld [vmem:[%s13] ss:$4 sm:$0xff]
  %vm15 = vcmask 261120
  %s16 = scalar_lea.vmem %s1, 2
  %17 = vst.msk [vmem:[%s16] ss:$8 sm:$0xf] %vm15, %v14
  %s18 = scalar_lea.vmem %s1, 2
  %19 = vst.msk [vmem:[%s18] ss:$8 sm:$0xf0] %vm15, %v14
  %s20 = scalar_lea.vmem %s0, 96
  %v21 = vld [vmem:[%s20] ss:$4 sm:$0xff]
  %vm22 = vcmask 261120
  %s23 = scalar_lea.vmem %s1, 3
  %24 = vst.msk [vmem:[%s23] ss:$8 sm:$0xf] %vm22, %v21
  %s25 = scalar_lea.vmem %s1, 3
  %26 = vst.msk [vmem:[%s25] ss:$8 sm:$0xf0] %vm22, %v21
  %s27 = scalar_lea.vmem %s0, 128
  %v28 = vld [vmem:[%s27] ss:$4 sm:$0xff]
  %vm29 = vcmask 261120
  %s30 = scalar_lea.vmem %s1, 4
  %31 = vst.msk [vmem:[%s30] ss:$8 sm:$0xf] %vm29, %v28
  %s32 = scalar_lea.vmem %s1, 4
  %33 = vst.msk [vmem:[%s32] ss:$8 sm:$0xf0] %vm29, %v28
  %s34 = scalar_lea.vmem %s0, 160
  %v35 = vld [vmem:[%s34] ss:$4 sm:$0xff]
  %vm36 = vcmask 261120
  %s37 = scalar_lea.vmem %s1, 5
  %38 = vst.msk [vmem:[%s37] ss:$8 sm:$0xf] %vm36, %v35
  %s39 = scalar_lea.vmem %s1, 5
  %40 = vst.msk [vmem:[%s39] ss:$8 sm:$0xf0] %vm36, %v35
  %s41 = scalar_lea.vmem %s0, 3
  %v42 = vld [vmem:[%s41] sm:$0x1]
  %s43 = scalar_lea.vmem %s0, 34
  %v44 = vld [vmem:[%s43] sm:$0x2]
  %vm45 = vcmask 1041409
  %v46 = vsel %vm45, %v44, %v42
  %s47 = scalar_lea.vmem %s0, 65
  %v48 = vld [vmem:[%s47] sm:$0x4]
  %vm49 = vcmask 1042434
  %v50 = vsel %vm49, %v48, %v46
  %s51 = scalar_lea.vmem %s0, 96
  %v52 = vld [vmem:[%s51] sm:$0x8]
  %vm53 = vcmask 1043459
  %v54 = vsel %vm53, %v52, %v50
  %s55 = scalar_lea.vmem %s0, 127
  %v56 = vld [vmem:[%s55] sm:$0x10]
  %vm57 = vcmask 1044484
  %v58 = vsel %vm57, %v56, %v54
  %s59 = scalar_lea.vmem %s0, 943
  %s60 = smov 96
  %v61 = vld [vmem:[%s59] ss:$-156 sm:%s60]
  %vm62 = vcmask 1046533
  %v63 = vsel %vm62, %v61, %v58
  %s64 = scalar_lea.vmem %s0, 32
  %v65 = vld [vmem:[%s64] sm:$0x80]
  %vm66 = vcmask 1047559
  %v67 = vsel %vm66, %v65, %v63
  %68 = vrot.lane.b32.xlu0 %v67, 96
  %v69 = vpop.permute.xlu0 %68
  %vm70 = vcmask 1048320
  %71 = vst.msk [vmem:[%s1] sm:$0x3f] %vm70, %v69
  %s72 = scalar_lea.vmem %s1, 2
  %73 = vst.msk [vmem:[%s72] sm:$0xc0] %vm70, %v69
  %s74 = scalar_lea.vmem %s0, 19
  %v75 = vld [vmem:[%s74] sm:$0x1]
  %s76 = scalar_lea.vmem %s0, 50
  %v77 = vld [vmem:[%s76] sm:$0x2]
  %vm78 = vcmask 1041409
  %v79 = vsel %vm78, %v77, %v75
  %s80 = scalar_lea.vmem %s0, 81
  %v81 = vld [vmem:[%s80] sm:$0x4]
  %vm82 = vcmask 1042434
  %v83 = vsel %vm82, %v81, %v79
  %s84 = scalar_lea.vmem %s0, 112
  %v85 = vld [vmem:[%s84] sm:$0x8]
  %vm86 = vcmask 1043459
  %v87 = vsel %vm86, %v85, %v83
  %s88 = scalar_lea.vmem %s0, 143
  %v89 = vld [vmem:[%s88] sm:$0x10]
  %vm90 = vcmask 1044484
  %v91 = vsel %vm90, %v89, %v87
  %s92 = scalar_lea.vmem %s0, 959
  %s93 = smov 96
  %v94 = vld [vmem:[%s92] ss:$-156 sm:%s93]
  %vm95 = vcmask 1046533
  %v96 = vsel %vm95, %v94, %v91
  %s97 = scalar_lea.vmem %s0, 48
  %v98 = vld [vmem:[%s97] sm:$0x80]
  %vm99 = vcmask 1047559
  %v100 = vsel %vm99, %v98, %v96
  %101 = vrot.lane.b32.xlu0 %v100, 96
  %v102 = vpop.permute.xlu0 %101
  %vm103 = vcmask 1048320
  %s104 = scalar_lea.vmem %s1, 32
  %105 = vst.msk [vmem:[%s104] sm:$0x3f] %vm103, %v102
  %s106 = scalar_lea.vmem %s1, 34
  %107 = vst.msk [vmem:[%s106] sm:$0xc0] %vm103, %v102
  %s108 = scalar_lea.vmem %s0, 71
  %v109 = vld [vmem:[%s108] sm:$0x1]
  %s110 = scalar_lea.vmem %s0, 102
  %v111 = vld [vmem:[%s110] sm:$0x2]
  %vm112 = vcmask 1041409
  %v113 = vsel %vm112, %v111, %v109
  %s114 = scalar_lea.vmem %s0, 133
  %v115 = vld [vmem:[%s114] sm:$0x4]
  %vm116 = vcmask 1042434
  %v117 = vsel %vm116, %v115, %v113
  %s118 = scalar_lea.vmem %s0, 635
  %s119 = smov 24
  %v120 = vld [vmem:[%s118] ss:$-156 sm:%s119]
  %vm121 = vcmask 1044483
  %v122 = vsel %vm121, %v120, %v117
  %s123 = scalar_lea.vmem %s0, 38
  %v124 = vld [vmem:[%s123] sm:$0x20]
  %vm125 = vcmask 1045509
  %v126 = vsel %vm125, %v124, %v122
  %s127 = scalar_lea.vmem %s0, 69
  %v128 = vld [vmem:[%s127] sm:$0x40]
  %vm129 = vcmask 1046534
  %v130 = vsel %vm129, %v128, %v126
  %s131 = scalar_lea.vmem %s0, 100
  %v132 = vld [vmem:[%s131] sm:$0x80]
  %vm133 = vcmask 1047559
  %v134 = vsel %vm133, %v132, %v130
  %135 = vrot.lane.b32.xlu0 %v134, 96
  %v136 = vpop.permute.xlu0 %135
  %vm137 = vcmask 1048320
  %s138 = scalar_lea.vmem %s1, 10
  %139 = vst.msk [vmem:[%s138] sm:$0xf] %vm137, %v136
  %s140 = scalar_lea.vmem %s1, 12
  %141 = vst.msk [vmem:[%s140] sm:$0xf0] %vm137, %v136
  %s142 = scalar_lea.vmem %s0, 87
  %v143 = vld [vmem:[%s142] sm:$0x1]
  %s144 = scalar_lea.vmem %s0, 118
  %v145 = vld [vmem:[%s144] sm:$0x2]
  %vm146 = vcmask 1041409
  %v147 = vsel %vm146, %v145, %v143
  %s148 = scalar_lea.vmem %s0, 149
  %v149 = vld [vmem:[%s148] sm:$0x4]
  %vm150 = vcmask 1042434
  %v151 = vsel %vm150, %v149, %v147
  %s152 = scalar_lea.vmem %s0, 651
  %s153 = smov 24
  %v154 = vld [vmem:[%s152] ss:$-156 sm:%s153]
  %vm155 = vcmask 1044483
  %v156 = vsel %vm155, %v154, %v151
  %s157 = scalar_lea.vmem %s0, 54
  %v158 = vld [vmem:[%s157] sm:$0x20]
  %vm159 = vcmask 1045509
  %v160 = vsel %vm159, %v158, %v156
  %s161 = scalar_lea.vmem %s0, 85
  %v162 = vld [vmem:[%s161] sm:$0x40]
  %vm163 = vcmask 1046534
  %v164 = vsel %vm163, %v162, %v160
  %s165 = scalar_lea.vmem %s0, 116
  %v166 = vld [vmem:[%s165] sm:$0x80]
  %vm167 = vcmask 1047559
  %v168 = vsel %vm167, %v166, %v164
  %169 = vrot.lane.b32.xlu0 %v168, 96
  %v170 = vpop.permute.xlu0 %169
  %vm171 = vcmask 1048320
  %s172 = scalar_lea.vmem %s1, 42
  %173 = vst.msk [vmem:[%s172] sm:$0xf] %vm171, %v170
  %s174 = scalar_lea.vmem %s1, 44
  %175 = vst.msk [vmem:[%s174] sm:$0xf0] %vm171, %v170
  %s176 = scalar_lea.vmem %s0, 139
  %v177 = vld [vmem:[%s176] sm:$0x1]
  %s178 = scalar_lea.vmem %s0, 327
  %s179 = smov 6
  %v180 = vld [vmem:[%s178] ss:$-156 sm:%s179]
  %vm181 = vcmask 1042433
  %v182 = vsel %vm181, %v180, %v177
  %s183 = scalar_lea.vmem %s0, 44
  %v184 = vld [vmem:[%s183] sm:$0x8]
  %vm185 = vcmask 1043459
  %v186 = vsel %vm185, %v184, %v182
  %s187 = scalar_lea.vmem %s0, 75
  %v188 = vld [vmem:[%s187] sm:$0x10]
  %vm189 = vcmask 1044484
  %v190 = vsel %vm189, %v188, %v186
  %s191 = scalar_lea.vmem %s0, 106
  %v192 = vld [vmem:[%s191] sm:$0x20]
  %vm193 = vcmask 1045509
  %v194 = vsel %vm193, %v192, %v190
  %s195 = scalar_lea.vmem %s0, 137
  %v196 = vld [vmem:[%s195] sm:$0x40]
  %vm197 = vcmask 1046534
  %v198 = vsel %vm197, %v196, %v194
  %s199 = scalar_lea.vmem %s0, 168
  %v200 = vld [vmem:[%s199] sm:$0x80]
  %vm201 = vcmask 1047559
  %v202 = vsel %vm201, %v200, %v198
  %203 = vrot.lane.b32.xlu0 %v202, 96
  %v204 = vpop.permute.xlu0 %203
  %vm205 = vcmask 1048320
  %s206 = scalar_lea.vmem %s1, 20
  %207 = vst.msk [vmem:[%s206] sm:$0x3] %vm205, %v204
  %s208 = scalar_lea.vmem %s1, 22
  %209 = vst.msk [vmem:[%s208] sm:$0xfc] %vm205, %v204
  %s210 = scalar_lea.vmem %s0, 155
  %v211 = vld [vmem:[%s210] sm:$0x1]
  %s212 = scalar_lea.vmem %s0, 343
  %s213 = smov 6
  %v214 = vld [vmem:[%s212] ss:$-156 sm:%s213]
  %vm215 = vcmask 1042433
  %v216 = vsel %vm215, %v214, %v211
  %s217 = scalar_lea.vmem %s0, 60
  %v218 = vld [vmem:[%s217] sm:$0x8]
  %vm219 = vcmask 1043459
  %v220 = vsel %vm219, %v218, %v216
  %s221 = scalar_lea.vmem %s0, 91
  %v222 = vld [vmem:[%s221] sm:$0x10]
  %vm223 = vcmask 1044484
  %v224 = vsel %vm223, %v222, %v220
  %s225 = scalar_lea.vmem %s0, 122
  %v226 = vld [vmem:[%s225] sm:$0x20]
  %vm227 = vcmask 1045509
  %v228 = vsel %vm227, %v226, %v224
  %s229 = scalar_lea.vmem %s0, 153
  %v230 = vld [vmem:[%s229] sm:$0x40]
  %vm231 = vcmask 1046534
  %v232 = vsel %vm231, %v230, %v228
  %s233 = scalar_lea.vmem %s0, 184
  %v234 = vld [vmem:[%s233] sm:$0x80]
  %vm235 = vcmask 1047559
  %v236 = vsel %vm235, %v234, %v232
  %237 = vrot.lane.b32.xlu0 %v236, 96
  %v238 = vpop.permute.xlu0 %237
  %vm239 = vcmask 1048320
  %s240 = scalar_lea.vmem %s1, 52
  %241 = vst.msk [vmem:[%s240] sm:$0x3] %vm239, %v238
  %s242 = scalar_lea.vmem %s1, 54
  %243 = vst.msk [vmem:[%s242] sm:$0xfc] %vm239, %v238
  %s244 = scalar_lea.vmem %s0, 2
  %v245 = vld [vmem:[%s244] sm:$0x1]
  %s246 = scalar_lea.vmem %s0, 33
  %v247 = vld [vmem:[%s246] sm:$0x2]
  %vm248 = vcmask 1041409
  %v249 = vsel %vm248, %v247, %v245
  %s250 = scalar_lea.vmem %s0, 64
  %v251 = vld [vmem:[%s250] sm:$0x4]
  %vm252 = vcmask 1042434
  %v253 = vsel %vm252, %v251, %v249
  %s254 = scalar_lea.vmem %s0, 95
  %v255 = vld [vmem:[%s254] sm:$0x8]
  %vm256 = vcmask 1043459
  %v257 = vsel %vm256, %v255, %v253
  %s258 = scalar_lea.vmem %s0, 126
  %v259 = vld [vmem:[%s258] sm:$0x10]
  %vm260 = vcmask 1044484
  %v261 = vsel %vm260, %v259, %v257
  %s262 = scalar_lea.vmem %s0, 942
  %s263 = smov 96
  %v264 = vld [vmem:[%s262] ss:$-156 sm:%s263]
  %vm265 = vcmask 1046533
  %v266 = vsel %vm265, %v264, %v261
  %s267 = scalar_lea.vmem %s0, 31
  %v268 = vld [vmem:[%s267] sm:$0x80]
  %vm269 = vcmask 1047559
  %v270 = vsel %vm269, %v268, %v266
  %271 = vrot.lane.b32.xlu0 %v270, 64
  %v272 = vpop.permute.xlu0 %271
  %vm273 = vcmask 785920
  %274 = vst.msk [vmem:[%s1] sm:$0x3f] %vm273, %v272
  %s275 = scalar_lea.vmem %s1, 2
  %276 = vst.msk [vmem:[%s275] sm:$0xc0] %vm273, %v272
  %s277 = scalar_lea.vmem %s0, 18
  %v278 = vld [vmem:[%s277] sm:$0x1]
  %s279 = scalar_lea.vmem %s0, 49
  %v280 = vld [vmem:[%s279] sm:$0x2]
  %vm281 = vcmask 1041409
  %v282 = vsel %vm281, %v280, %v278
  %s283 = scalar_lea.vmem %s0, 80
  %v284 = vld [vmem:[%s283] sm:$0x4]
  %vm285 = vcmask 1042434
  %v286 = vsel %vm285, %v284, %v282
  %s287 = scalar_lea.vmem %s0, 111
  %v288 = vld [vmem:[%s287] sm:$0x8]
  %vm289 = vcmask 1043459
  %v290 = vsel %vm289, %v288, %v286
  %s291 = scalar_lea.vmem %s0, 142
  %v292 = vld [vmem:[%s291] sm:$0x10]
  %vm293 = vcmask 1044484
  %v294 = vsel %vm293, %v292, %v290
  %s295 = scalar_lea.vmem %s0, 958
  %s296 = smov 96
  %v297 = vld [vmem:[%s295] ss:$-156 sm:%s296]
  %vm298 = vcmask 1046533
  %v299 = vsel %vm298, %v297, %v294
  %s300 = scalar_lea.vmem %s0, 47
  %v301 = vld [vmem:[%s300] sm:$0x80]
  %vm302 = vcmask 1047559
  %v303 = vsel %vm302, %v301, %v299
  %304 = vrot.lane.b32.xlu0 %v303, 64
  %v305 = vpop.permute.xlu0 %304
  %vm306 = vcmask 785920
  %s307 = scalar_lea.vmem %s1, 32
  %308 = vst.msk [vmem:[%s307] sm:$0x3f] %vm306, %v305
  %s309 = scalar_lea.vmem %s1, 34
  %310 = vst.msk [vmem:[%s309] sm:$0xc0] %vm306, %v305
  %s311 = scalar_lea.vmem %s0, 70
  %v312 = vld [vmem:[%s311] sm:$0x1]
  %s313 = scalar_lea.vmem %s0, 101
  %v314 = vld [vmem:[%s313] sm:$0x2]
  %vm315 = vcmask 1041409
  %v316 = vsel %vm315, %v314, %v312
  %s317 = scalar_lea.vmem %s0, 132
  %v318 = vld [vmem:[%s317] sm:$0x4]
  %vm319 = vcmask 1042434
  %v320 = vsel %vm319, %v318, %v316
  %s321 = scalar_lea.vmem %s0, 634
  %s322 = smov 24
  %v323 = vld [vmem:[%s321] ss:$-156 sm:%s322]
  %vm324 = vcmask 1044483
  %v325 = vsel %vm324, %v323, %v320
  %s326 = scalar_lea.vmem %s0, 37
  %v327 = vld [vmem:[%s326] sm:$0x20]
  %vm328 = vcmask 1045509
  %v329 = vsel %vm328, %v327, %v325
  %s330 = scalar_lea.vmem %s0, 68
  %v331 = vld [vmem:[%s330] sm:$0x40]
  %vm332 = vcmask 1046534
  %v333 = vsel %vm332, %v331, %v329
  %s334 = scalar_lea.vmem %s0, 99
  %v335 = vld [vmem:[%s334] sm:$0x80]
  %vm336 = vcmask 1047559
  %v337 = vsel %vm336, %v335, %v333
  %338 = vrot.lane.b32.xlu0 %v337, 64
  %v339 = vpop.permute.xlu0 %338
  %vm340 = vcmask 785920
  %s341 = scalar_lea.vmem %s1, 10
  %342 = vst.msk [vmem:[%s341] sm:$0xf] %vm340, %v339
  %s343 = scalar_lea.vmem %s1, 12
  %344 = vst.msk [vmem:[%s343] sm:$0xf0] %vm340, %v339
  %s345 = scalar_lea.vmem %s0, 86
  %v346 = vld [vmem:[%s345] sm:$0x1]
  %s347 = scalar_lea.vmem %s0, 117
  %v348 = vld [vmem:[%s347] sm:$0x2]
  %vm349 = vcmask 1041409
  %v350 = vsel %vm349, %v348, %v346
  %s351 = scalar_lea.vmem %s0, 148
  %v352 = vld [vmem:[%s351] sm:$0x4]
  %vm353 = vcmask 1042434
  %v354 = vsel %vm353, %v352, %v350
  %s355 = scalar_lea.vmem %s0, 650
  %s356 = smov 24
  %v357 = vld [vmem:[%s355] ss:$-156 sm:%s356]
  %vm358 = vcmask 1044483
  %v359 = vsel %vm358, %v357, %v354
  %s360 = scalar_lea.vmem %s0, 53
  %v361 = vld [vmem:[%s360] sm:$0x20]
  %vm362 = vcmask 1045509
  %v363 = vsel %vm362, %v361, %v359
  %s364 = scalar_lea.vmem %s0, 84
  %v365 = vld [vmem:[%s364] sm:$0x40]
  %vm366 = vcmask 1046534
  %v367 = vsel %vm366, %v365, %v363
  %s368 = scalar_lea.vmem %s0, 115
  %v369 = vld [vmem:[%s368] sm:$0x80]
  %vm370 = vcmask 1047559
  %v371 = vsel %vm370, %v369, %v367
  %372 = vrot.lane.b32.xlu0 %v371, 64
  %v373 = vpop.permute.xlu0 %372
  %vm374 = vcmask 785920
  %s375 = scalar_lea.vmem %s1, 42
  %376 = vst.msk [vmem:[%s375] sm:$0xf] %vm374, %v373
  %s377 = scalar_lea.vmem %s1, 44
  %378 = vst.msk [vmem:[%s377] sm:$0xf0] %vm374, %v373
  %s379 = scalar_lea.vmem %s0, 138
  %v380 = vld [vmem:[%s379] sm:$0x1]
  %s381 = scalar_lea.vmem %s0, 326
  %s382 = smov 6
  %v383 = vld [vmem:[%s381] ss:$-156 sm:%s382]
  %vm384 = vcmask 1042433
  %v385 = vsel %vm384, %v383, %v380
  %s386 = scalar_lea.vmem %s0, 43
  %v387 = vld [vmem:[%s386] sm:$0x8]
  %vm388 = vcmask 1043459
  %v389 = vsel %vm388, %v387, %v385
  %s390 = scalar_lea.vmem %s0, 74
  %v391 = vld [vmem:[%s390] sm:$0x10]
  %vm392 = vcmask 1044484
  %v393 = vsel %vm392, %v391, %v389
  %s394 = scalar_lea.vmem %s0, 105
  %v395 = vld [vmem:[%s394] sm:$0x20]
  %vm396 = vcmask 1045509
  %v397 = vsel %vm396, %v395, %v393
  %s398 = scalar_lea.vmem %s0, 136
  %v399 = vld [vmem:[%s398] sm:$0x40]
  %vm400 = vcmask 1046534
  %v401 = vsel %vm400, %v399, %v397
  %s402 = scalar_lea.vmem %s0, 167
  %v403 = vld [vmem:[%s402] sm:$0x80]
  %vm404 = vcmask 1047559
  %v405 = vsel %vm404, %v403, %v401
  %406 = vrot.lane.b32.xlu0 %v405, 64
  %v407 = vpop.permute.xlu0 %406
  %vm408 = vcmask 785920
  %s409 = scalar_lea.vmem %s1, 20
  %410 = vst.msk [vmem:[%s409] sm:$0x3] %vm408, %v407
  %s411 = scalar_lea.vmem %s1, 22
  %412 = vst.msk [vmem:[%s411] sm:$0xfc] %vm408, %v407
  %s413 = scalar_lea.vmem %s0, 154
  %v414 = vld [vmem:[%s413] sm:$0x1]
  %s415 = scalar_lea.vmem %s0, 342
  %s416 = smov 6
  %v417 = vld [vmem:[%s415] ss:$-156 sm:%s416]
  %vm418 = vcmask 1042433
  %v419 = vsel %vm418, %v417, %v414
  %s420 = scalar_lea.vmem %s0, 59
  %v421 = vld [vmem:[%s420] sm:$0x8]
  %vm422 = vcmask 1043459
  %v423 = vsel %vm422, %v421, %v419
  %s424 = scalar_lea.vmem %s0, 90
  %v425 = vld [vmem:[%s424] sm:$0x10]
  %vm426 = vcmask 1044484
  %v427 = vsel %vm426, %v425, %v423
  %s428 = scalar_lea.vmem %s0, 121
  %v429 = vld [vmem:[%s428] sm:$0x20]
  %vm430 = vcmask 1045509
  %v431 = vsel %vm430, %v429, %v427
  %s432 = scalar_lea.vmem %s0, 152
  %v433 = vld [vmem:[%s432] sm:$0x40]
  %vm434 = vcmask 1046534
  %v435 = vsel %vm434, %v433, %v431
  %s436 = scalar_lea.vmem %s0, 183
  %v437 = vld [vmem:[%s436] sm:$0x80]
  %vm438 = vcmask 1047559
  %v439 = vsel %vm438, %v437, %v435
  %440 = vrot.lane.b32.xlu0 %v439, 64
  %v441 = vpop.permute.xlu0 %440
  %vm442 = vcmask 785920
  %s443 = scalar_lea.vmem %s1, 52
  %444 = vst.msk [vmem:[%s443] sm:$0x3] %vm442, %v441
  %s445 = scalar_lea.vmem %s1, 54
  %446 = vst.msk [vmem:[%s445] sm:$0xfc] %vm442, %v441
  %s447 = scalar_lea.vmem %s0, 1
  %v448 = vld [vmem:[%s447] sm:$0x1]
  %s449 = scalar_lea.vmem %s0, 32
  %v450 = vld [vmem:[%s449] sm:$0x2]
  %vm451 = vcmask 1041409
  %v452 = vsel %vm451, %v450, %v448
  %s453 = scalar_lea.vmem %s0, 63
  %v454 = vld [vmem:[%s453] sm:$0x4]
  %vm455 = vcmask 1042434
  %v456 = vsel %vm455, %v454, %v452
  %s457 = scalar_lea.vmem %s0, 94
  %v458 = vld [vmem:[%s457] sm:$0x8]
  %vm459 = vcmask 1043459
  %v460 = vsel %vm459, %v458, %v456
  %s461 = scalar_lea.vmem %s0, 125
  %v462 = vld [vmem:[%s461] sm:$0x10]
  %vm463 = vcmask 1044484
  %v464 = vsel %vm463, %v462, %v460
  %s465 = scalar_lea.vmem %s0, 941
  %s466 = smov 96
  %v467 = vld [vmem:[%s465] ss:$-156 sm:%s466]
  %vm468 = vcmask 1046533
  %v469 = vsel %vm468, %v467, %v464
  %s470 = scalar_lea.vmem %s0, 30
  %v471 = vld [vmem:[%s470] sm:$0x80]
  %vm472 = vcmask 1047559
  %v473 = vsel %vm472, %v471, %v469
  %474 = vrot.lane.b32.xlu0 %v473, 32
  %v475 = vpop.permute.xlu0 %474
  %vm476 = vcmask 523520
  %477 = vst.msk [vmem:[%s1] sm:$0x3f] %vm476, %v475
  %s478 = scalar_lea.vmem %s1, 2
  %479 = vst.msk [vmem:[%s478] sm:$0xc0] %vm476, %v475
  %s480 = scalar_lea.vmem %s0, 17
  %v481 = vld [vmem:[%s480] sm:$0x1]
  %s482 = scalar_lea.vmem %s0, 48
  %v483 = vld [vmem:[%s482] sm:$0x2]
  %vm484 = vcmask 1041409
  %v485 = vsel %vm484, %v483, %v481
  %s486 = scalar_lea.vmem %s0, 79
  %v487 = vld [vmem:[%s486] sm:$0x4]
  %vm488 = vcmask 1042434
  %v489 = vsel %vm488, %v487, %v485
  %s490 = scalar_lea.vmem %s0, 110
  %v491 = vld [vmem:[%s490] sm:$0x8]
  %vm492 = vcmask 1043459
  %v493 = vsel %vm492, %v491, %v489
  %s494 = scalar_lea.vmem %s0, 141
  %v495 = vld [vmem:[%s494] sm:$0x10]
  %vm496 = vcmask 1044484
  %v497 = vsel %vm496, %v495, %v493
  %s498 = scalar_lea.vmem %s0, 957
  %s499 = smov 96
  %v500 = vld [vmem:[%s498] ss:$-156 sm:%s499]
  %vm501 = vcmask 1046533
  %v502 = vsel %vm501, %v500, %v497
  %s503 = scalar_lea.vmem %s0, 46
  %v504 = vld [vmem:[%s503] sm:$0x80]
  %vm505 = vcmask 1047559
  %v506 = vsel %vm505, %v504, %v502
  %507 = vrot.lane.b32.xlu0 %v506, 32
  %v508 = vpop.permute.xlu0 %507
  %vm509 = vcmask 523520
  %s510 = scalar_lea.vmem %s1, 32
  %511 = vst.msk [vmem:[%s510] sm:$0x3f] %vm509, %v508
  %s512 = scalar_lea.vmem %s1, 34
  %513 = vst.msk [vmem:[%s512] sm:$0xc0] %vm509, %v508
  %s514 = scalar_lea.vmem %s0, 69
  %v515 = vld [vmem:[%s514] sm:$0x1]
  %s516 = scalar_lea.vmem %s0, 100
  %v517 = vld [vmem:[%s516] sm:$0x2]
  %vm518 = vcmask 1041409
  %v519 = vsel %vm518, %v517, %v515
  %s520 = scalar_lea.vmem %s0, 131
  %v521 = vld [vmem:[%s520] sm:$0x4]
  %vm522 = vcmask 1042434
  %v523 = vsel %vm522, %v521, %v519
  %s524 = scalar_lea.vmem %s0, 633
  %s525 = smov 24
  %v526 = vld [vmem:[%s524] ss:$-156 sm:%s525]
  %vm527 = vcmask 1044483
  %v528 = vsel %vm527, %v526, %v523
  %s529 = scalar_lea.vmem %s0, 36
  %v530 = vld [vmem:[%s529] sm:$0x20]
  %vm531 = vcmask 1045509
  %v532 = vsel %vm531, %v530, %v528
  %s533 = scalar_lea.vmem %s0, 67
  %v534 = vld [vmem:[%s533] sm:$0x40]
  %vm535 = vcmask 1046534
  %v536 = vsel %vm535, %v534, %v532
  %s537 = scalar_lea.vmem %s0, 98
  %v538 = vld [vmem:[%s537] sm:$0x80]
  %vm539 = vcmask 1047559
  %v540 = vsel %vm539, %v538, %v536
  %541 = vrot.lane.b32.xlu0 %v540, 32
  %v542 = vpop.permute.xlu0 %541
  %vm543 = vcmask 523520
  %s544 = scalar_lea.vmem %s1, 10
  %545 = vst.msk [vmem:[%s544] sm:$0xf] %vm543, %v542
  %s546 = scalar_lea.vmem %s1, 12
  %547 = vst.msk [vmem:[%s546] sm:$0xf0] %vm543, %v542
  %s548 = scalar_lea.vmem %s0, 85
  %v549 = vld [vmem:[%s548] sm:$0x1]
  %s550 = scalar_lea.vmem %s0, 116
  %v551 = vld [vmem:[%s550] sm:$0x2]
  %vm552 = vcmask 1041409
  %v553 = vsel %vm552, %v551, %v549
  %s554 = scalar_lea.vmem %s0, 147
  %v555 = vld [vmem:[%s554] sm:$0x4]
  %vm556 = vcmask 1042434
  %v557 = vsel %vm556, %v555, %v553
  %s558 = scalar_lea.vmem %s0, 649
  %s559 = smov 24
  %v560 = vld [vmem:[%s558] ss:$-156 sm:%s559]
  %vm561 = vcmask 1044483
  %v562 = vsel %vm561, %v560, %v557
  %s563 = scalar_lea.vmem %s0, 52
  %v564 = vld [vmem:[%s563] sm:$0x20]
  %vm565 = vcmask 1045509
  %v566 = vsel %vm565, %v564, %v562
  %s567 = scalar_lea.vmem %s0, 83
  %v568 = vld [vmem:[%s567] sm:$0x40]
  %vm569 = vcmask 1046534
  %v570 = vsel %vm569, %v568, %v566
  %s571 = scalar_lea.vmem %s0, 114
  %v572 = vld [vmem:[%s571] sm:$0x80]
  %vm573 = vcmask 1047559
  %v574 = vsel %vm573, %v572, %v570
  %575 = vrot.lane.b32.xlu0 %v574, 32
  %v576 = vpop.permute.xlu0 %575
  %vm577 = vcmask 523520
  %s578 = scalar_lea.vmem %s1, 42
  %579 = vst.msk [vmem:[%s578] sm:$0xf] %vm577, %v576
  %s580 = scalar_lea.vmem %s1, 44
  %581 = vst.msk [vmem:[%s580] sm:$0xf0] %vm577, %v576
  %s582 = scalar_lea.vmem %s0, 137
  %v583 = vld [vmem:[%s582] sm:$0x1]
  %s584 = scalar_lea.vmem %s0, 325
  %s585 = smov 6
  %v586 = vld [vmem:[%s584] ss:$-156 sm:%s585]
  %vm587 = vcmask 1042433
  %v588 = vsel %vm587, %v586, %v583
  %s589 = scalar_lea.vmem %s0, 42
  %v590 = vld [vmem:[%s589] sm:$0x8]
  %vm591 = vcmask 1043459
  %v592 = vsel %vm591, %v590, %v588
  %s593 = scalar_lea.vmem %s0, 73
  %v594 = vld [vmem:[%s593] sm:$0x10]
  %vm595 = vcmask 1044484
  %v596 = vsel %vm595, %v594, %v592
  %s597 = scalar_lea.vmem %s0, 104
  %v598 = vld [vmem:[%s597] sm:$0x20]
  %vm599 = vcmask 1045509
  %v600 = vsel %vm599, %v598, %v596
  %s601 = scalar_lea.vmem %s0, 135
  %v602 = vld [vmem:[%s601] sm:$0x40]
  %vm603 = vcmask 1046534
  %v604 = vsel %vm603, %v602, %v600
  %s605 = scalar_lea.vmem %s0, 166
  %v606 = vld [vmem:[%s605] sm:$0x80]
  %vm607 = vcmask 1047559
  %v608 = vsel %vm607, %v606, %v604
  %609 = vrot.lane.b32.xlu0 %v608, 32
  %v610 = vpop.permute.xlu0 %609
  %vm611 = vcmask 523520
  %s612 = scalar_lea.vmem %s1, 20
  %613 = vst.msk [vmem:[%s612] sm:$0x3] %vm611, %v610
  %s614 = scalar_lea.vmem %s1, 22
  %615 = vst.msk [vmem:[%s614] sm:$0xfc] %vm611, %v610
  %s616 = scalar_lea.vmem %s0, 153
  %v617 = vld [vmem:[%s616] sm:$0x1]
  %s618 = scalar_lea.vmem %s0, 341
  %s619 = smov 6
  %v620 = vld [vmem:[%s618] ss:$-156 sm:%s619]
  %vm621 = vcmask 1042433
  %v622 = vsel %vm621, %v620, %v617
  %s623 = scalar_lea.vmem %s0, 58
  %v624 = vld [vmem:[%s623] sm:$0x8]
  %vm625 = vcmask 1043459
  %v626 = vsel %vm625, %v624, %v622
  %s627 = scalar_lea.vmem %s0, 89
  %v628 = vld [vmem:[%s627] sm:$0x10]
  %vm629 = vcmask 1044484
  %v630 = vsel %vm629, %v628, %v626
  %s631 = scalar_lea.vmem %s0, 120
  %v632 = vld [vmem:[%s631] sm:$0x20]
  %vm633 = vcmask 1045509
  %v634 = vsel %vm633, %v632, %v630
  %s635 = scalar_lea.vmem %s0, 151
  %v636 = vld [vmem:[%s635] sm:$0x40]
  %vm637 = vcmask 1046534
  %v638 = vsel %vm637, %v636, %v634
  %s639 = scalar_lea.vmem %s0, 182
  %v640 = vld [vmem:[%s639] sm:$0x80]
  %vm641 = vcmask 1047559
  %v642 = vsel %vm641, %v640, %v638
  %643 = vrot.lane.b32.xlu0 %v642, 32
  %v644 = vpop.permute.xlu0 %643
  %vm645 = vcmask 523520
  %s646 = scalar_lea.vmem %s1, 52
  %647 = vst.msk [vmem:[%s646] sm:$0x3] %vm645, %v644
  %s648 = scalar_lea.vmem %s1, 54
  %649 = vst.msk [vmem:[%s648] sm:$0xfc] %vm645, %v644

// kernel: model_forward.1
$region0: #{model_forward.1}
  #allocation0 [shape = 'u32[]', space=smem, size = 0x4, offset = 0x4, fixed_abs, tag = 'smem constant byte address 0x4 - core index']
  #allocation1 [shape = 'u32[144,128]{1,0:T(1,128)}', space=vmem, size = 0x12000, scoped, tag = 'internal scratch']
  #allocation2 [shape = 'f32[48,960]{1,0:T(8,128)}', space=vmem, size = 0x30000, scoped, tag = 'scratch operand']
  %s0 = inlined_call_operand.vmem [shape: f32[6,1152], index: 0, kind: input, shape index: {}]
  %s1 = inlined_call_operand.vmem [shape: f32[6,1], index: 1, kind: input, shape index: {}]
  %s2 = inlined_call_operand.vmem [shape: f32[6,1], index: 2, kind: input, shape index: {}]
  %s3 = inlined_call_operand.vmem [shape: f32[12,48], index: 3, kind: input, shape index: {}]
  %s4 = inlined_call_operand.vmem [shape: f32[12,1], index: 4, kind: input, shape index: {}]
  %s5 = inlined_call_operand.vmem [shape: f32[12,960], index: 5, kind: output, shape index: {}]
  %s6 = sld [smem:[#allocation0]]
  $region30: #{model_forward.1} parent=0
    _
  %s8 = ssub.s32 1, %s6
  %s9 = scalar_select 0, %s8, %s6
  // Predicated region
  $region2: #{model_forward.1} parent=0 // pred_check
    _
  $region3: #{model_forward.1} parent=0 // pred_check_branch
    %11 = sbr.rel (0) target = $region5
  $region4: #{model_forward.1} parent=0 // pred_region
    _
  $region5: #{model_forward.1} parent=0 // pred_fallthru
    _
  // Predicated region
  $region6: #{model_forward.1} parent=0 // pred_check
    _
  $region7: #{model_forward.1} parent=0 // pred_check_branch
    %13 = sbr.rel (0) target = $region9
  $region8: #{model_forward.1} parent=0 // pred_region
    _
  $region9: #{model_forward.1} parent=0 // pred_fallthru
    _
  // Predicated region
  $region10: #{model_forward.1} parent=0 // pred_check
    _
  $region11: #{model_forward.1} parent=0 // pred_check_branch
    %15 = sbr.rel (0) target = $region13
  $region12: #{model_forward.1} parent=0 // pred_region
    _
  $region13: #{model_forward.1} parent=0 // pred_fallthru
    _
  // Predicated region
  $region14: #{model_forward.1} parent=0 // pred_check
    _
  $region15: #{model_forward.1} parent=0 // pred_check_branch
    %17 = sbr.rel (0) target = $region17
  $region16: #{model_forward.1} parent=0 // pred_region
    _
  $region17: #{model_forward.1} parent=0 // pred_fallthru
    _
  // Predicated region
  $region18: #{model_forward.1} parent=0 // pred_check
    _
  $region19: #{model_forward.1} parent=0 // pred_check_branch
    %19 = sbr.rel (0) target = $region21
  $region20: #{model_forward.1} parent=0 // pred_region
    _
  $region21: #{model_forward.1} parent=0 // pred_fallthru
    _
  %v20 = vld [vmem:[%s0] sm:$0x3f]
  %v21 = vld [vmem:[%s0 + $0x8] sm:$0x3f]
  %v22 = vld [vmem:[%s0 + $0x10] sm:$0x3f]
  %v23 = vld [vmem:[%s0 + $0x18] sm:$0x3f]
  %v24 = vld [vmem:[%s0 + $0x20] sm:$0x3f]
  %v25 = vld [vmem:[%s0 + $0x28] sm:$0x3f]
  %v26 = vld [vmem:[%s0 + $0x30] sm:$0x3f]
  %v27 = vld [vmem:[%s0 + $0x38] sm:$0x3f]
  %v28 = vld [vmem:[%s0 + $0x40] sm:$0x3f]
  %vm29 = vcmask 1045504
  %v30 = vsel %vm29, %v20, 0.0
  %v31 = vsel %vm29, %v21, 0.0
  %v32 = vadd.f32 %v30, %v31
  %v33 = vsel %vm29, %v22, 0.0
  %v34 = vadd.f32 %v32, %v33
  %v35 = vsel %vm29, %v23, 0.0
  %v36 = vadd.f32 %v34, %v35
  %v37 = vsel %vm29, %v24, 0.0
  %v38 = vadd.f32 %v36, %v37
  %v39 = vsel %vm29, %v25, 0.0
  %v40 = vadd.f32 %v38, %v39
  %v41 = vsel %vm29, %v26, 0.0
  %v42 = vadd.f32 %v40, %v41
  %v43 = vsel %vm29, %v27, 0.0
  %v44 = vadd.f32 %v42, %v43
  %45 = vadd.xlane.f32.xlu0 %v44
  %v46 = vpop.xlane.xlu0 %45
  %v47 = vmul.f32 %v20, %v20
  %v48 = vmul.f32 %v21, %v21
  %v49 = vmul.f32 %v22, %v22
  %v50 = vmul.f32 %v23, %v23
  %v51 = vmul.f32 %v24, %v24
  %v52 = vmul.f32 %v25, %v25
  %v53 = vmul.f32 %v26, %v26
  %v54 = vmul.f32 %v27, %v27
  %v55 = vsel %vm29, %v47, 0.0
  %v56 = vsel %vm29, %v48, 0.0
  %v57 = vadd.f32 %v55, %v56
  %v58 = vsel %vm29, %v49, 0.0
  %v59 = vadd.f32 %v57, %v58
  %v60 = vsel %vm29, %v50, 0.0
  %v61 = vadd.f32 %v59, %v60
  %v62 = vsel %vm29, %v51, 0.0
  %v63 = vadd.f32 %v61, %v62
  %v64 = vsel %vm29, %v52, 0.0
  %v65 = vadd.f32 %v63, %v64
  %v66 = vsel %vm29, %v53, 0.0
  %v67 = vadd.f32 %v65, %v66
  %v68 = vsel %vm29, %v54, 0.0
  %v69 = vadd.f32 %v67, %v68
  %70 = vadd.xlane.f32.xlu0 %v69
  %v71 = vpop.xlane.xlu0 %70
  %v72 = vmul.f32 %v46, 0.0009765625
  %v73 = vmul.f32 %v71, 0.0009765625
  %v74 = vmul.f32 %v72, %v72
  %v75 = vsub.f32 %v73, %v74
  %v76 = vadd.f32 %v75, 1e-05
  %v77 = vrsqrt.pop %v76
  %v78 = vld [vmem:[%s1] sm:$0x3f]
  %v79 = vmul.f32 %v78, %v77
  %v80 = vld [vmem:[%s2] sm:$0x3f]
  %v81 = vmul.f32 %v72, %v79
  %v82 = vsub.f32 %v80, %v81
  %84 = vset.pattern.permute.xlu0 0
  %85 = vperm.xlu0 %84, %v79
  %v86 = vpop.permute.xlu0 %85
  %v88 = vmul.f32 %v20, %v86
  %v89 = vmul.f32 %v21, %v86
  %v90 = vmul.f32 %v22, %v86
  %v91 = vmul.f32 %v23, %v86
  %v92 = vmul.f32 %v24, %v86
  %v93 = vmul.f32 %v25, %v86
  %v94 = vmul.f32 %v26, %v86
  %v95 = vmul.f32 %v27, %v86
  %v96 = vmul.f32 %v28, %v86
  %98 = vset.pattern.permute.xlu0 0
  %99 = vperm.xlu0 %98, %v82
  %v100 = vpop.permute.xlu0 %99
  %v102 = vadd.f32 %v88, %v100
  %v103 = vadd.f32 %v89, %v100
  %v104 = vadd.f32 %v90, %v100
  %v105 = vadd.f32 %v91, %v100
  %v106 = vadd.f32 %v92, %v100
  %v107 = vadd.f32 %v93, %v100
  %v108 = vadd.f32 %v94, %v100
  %v109 = vadd.f32 %v95, %v100
  %v110 = vadd.f32 %v96, %v100
  %111 = vst [vmem:[#allocation2] sm:$0xff] 0.0
  %112 = vst [vmem:[#allocation2 + $0x8] sm:$0xff] 0.0
  %113 = vst [vmem:[#allocation2 + $0x10] sm:$0xff] 0.0
  %114 = vst [vmem:[#allocation2 + $0x18] sm:$0xff] 0.0
  %115 = vst [vmem:[#allocation2 + $0x20] sm:$0xff] 0.0
  %116 = vst [vmem:[#allocation2 + $0x28] sm:$0xff] 0.0
  %117 = vst [vmem:[#allocation2 + $0x30] sm:$0xff] 0.0
  %vm118 = vcmask 523264
  %119 = vst.msk [vmem:[#allocation2 + $0x38] sm:$0xff] %vm118, 0.0
  %120 = vst [vmem:[#allocation2 + $0x40] sm:$0xff] 0.0
  %121 = vst [vmem:[#allocation2 + $0x48] sm:$0xff] 0.0
  %122 = vst [vmem:[#allocation2 + $0x50] sm:$0xff] 0.0
  %123 = vst [vmem:[#allocation2 + $0x58] sm:$0xff] 0.0
  %124 = vst [vmem:[#allocation2 + $0x60] sm:$0xff] 0.0
  %125 = vst [vmem:[#allocation2 + $0x68] sm:$0xff] 0.0
  %126 = vst [vmem:[#allocation2 + $0x70] sm:$0xff] 0.0
  %127 = vst.msk [vmem:[#allocation2 + $0x78] sm:$0xff] %vm118, 0.0
  %128 = vst [vmem:[#allocation2 + $0x80] sm:$0xff] 0.0
  %129 = vst [vmem:[#allocation2 + $0x88] sm:$0xff] 0.0
  %130 = vst [vmem:[#allocation2 + $0x90] sm:$0xff] 0.0
  %131 = vst [vmem:[#allocation2 + $0x98] sm:$0xff] 0.0
  %132 = vst [vmem:[#allocation2 + $0xa0] sm:$0xff] 0.0
  %133 = vst [vmem:[#allocation2 + $0xa8] sm:$0xff] 0.0
  %134 = vst [vmem:[#allocation2 + $0xb0] sm:$0xff] 0.0
  %135 = vst.msk [vmem:[#allocation2 + $0xb8] sm:$0xff] %vm118, 0.0
  %136 = vst [vmem:[#allocation2 + $0xc0] sm:$0xff] 0.0
  %137 = vst [vmem:[#allocation2 + $0xc8] sm:$0xff] 0.0
  %138 = vst [vmem:[#allocation2 + $0xd0] sm:$0xff] 0.0
  %139 = vst [vmem:[#allocation2 + $0xd8] sm:$0xff] 0.0
  %140 = vst [vmem:[#allocation2 + $0xe0] sm:$0xff] 0.0
  %141 = vst [vmem:[#allocation2 + $0xe8] sm:$0xff] 0.0
  %142 = vst [vmem:[#allocation2 + $0xf0] sm:$0xff] 0.0
  %143 = vst.msk [vmem:[#allocation2 + $0xf8] sm:$0xff] %vm118, 0.0
  %144 = vst [vmem:[#allocation2 + $0x100] sm:$0xff] 0.0
  %145 = vst [vmem:[#allocation2 + $0x108] sm:$0xff] 0.0
  %146 = vst [vmem:[#allocation2 + $0x110] sm:$0xff] 0.0
  %147 = vst [vmem:[#allocation2 + $0x118] sm:$0xff] 0.0
  %148 = vst [vmem:[#allocation2 + $0x120] sm:$0xff] 0.0
  %149 = vst [vmem:[#allocation2 + $0x128] sm:$0xff] 0.0
  %150 = vst [vmem:[#allocation2 + $0x130] sm:$0xff] 0.0
  %151 = vst.msk [vmem:[#allocation2 + $0x138] sm:$0xff] %vm118, 0.0
  %152 = vst [vmem:[#allocation2 + $0x140] sm:$0xff] 0.0
  %153 = vst [vmem:[#allocation2 + $0x148] sm:$0xff] 0.0
  %154 = vst [vmem:[#allocation2 + $0x150] sm:$0xff] 0.0
  %155 = vst [vmem:[#allocation2 + $0x158] sm:$0xff] 0.0
  %156 = vst [vmem:[#allocation2 + $0x160] sm:$0xff] 0.0
  %157 = vst [vmem:[#allocation2 + $0x168] sm:$0xff] 0.0
  %158 = vst [vmem:[#allocation2 + $0x170] sm:$0xff] 0.0
  %159 = vst.msk [vmem:[#allocation2 + $0x178] sm:$0xff] %vm118, 0.0
  %168 = vrot.lane.b32.xlu0 %v102, 64
  %v169 = vpop.permute.xlu0 %168
  %170 = vrot.lane.b32.xlu0 %v103, 64
  %v171 = vpop.permute.xlu0 %170
  %172 = vrot.lane.b32.xlu0 %v104, 64
  %v173 = vpop.permute.xlu0 %172
  %174 = vrot.lane.b32.xlu0 %v105, 64
  %v175 = vpop.permute.xlu0 %174
  %176 = vrot.lane.b32.xlu0 %v106, 64
  %v177 = vpop.permute.xlu0 %176
  %178 = vrot.lane.b32.xlu0 %v107, 64
  %v179 = vpop.permute.xlu0 %178
  %180 = vrot.lane.b32.xlu0 %v108, 64
  %v181 = vpop.permute.xlu0 %180
  %182 = vrot.lane.b32.xlu0 %v109, 64
  %v183 = vpop.permute.xlu0 %182
  %v184 = vsel %vm118, %v169, %v171
  %v185 = vsel %vm118, %v171, %v173
  %v186 = vsel %vm118, %v173, %v175
  %v187 = vsel %vm118, %v175, %v177
  %v188 = vsel %vm118, %v177, %v179
  %v189 = vsel %vm118, %v179, %v181
  %v190 = vsel %vm118, %v181, %v183
  %199 = vst [vmem:[#allocation2] sm:$0x3f] %v184
  %200 = vst [vmem:[#allocation2 + $0x8] sm:$0x3f] %v185
  %201 = vst [vmem:[#allocation2 + $0x10] sm:$0x3f] %v186
  %202 = vst [vmem:[#allocation2 + $0x18] sm:$0x3f] %v187
  %203 = vst [vmem:[#allocation2 + $0x20] sm:$0x3f] %v188
  %204 = vst [vmem:[#allocation2 + $0x28] sm:$0x3f] %v189
  %205 = vst [vmem:[#allocation2 + $0x30] sm:$0x3f] %v190
  %vm206 = vcmask 521216
  %207 = vst.msk [vmem:[#allocation2 + $0x38] sm:$0x3f] %vm206, %v183
  %208 = vrot.lane.b32.xlu0 %v102, 96
  %v209 = vpop.permute.xlu0 %208
  %210 = vrot.lane.b32.xlu0 %v103, 96
  %v211 = vpop.permute.xlu0 %210
  %212 = vrot.lane.b32.xlu0 %v104, 96
  %v213 = vpop.permute.xlu0 %212
  %214 = vrot.lane.b32.xlu0 %v105, 96
  %v215 = vpop.permute.xlu0 %214
  %216 = vrot.lane.b32.xlu0 %v106, 96
  %v217 = vpop.permute.xlu0 %216
  %218 = vrot.lane.b32.xlu0 %v107, 96
  %v219 = vpop.permute.xlu0 %218
  %220 = vrot.lane.b32.xlu0 %v108, 96
  %v221 = vpop.permute.xlu0 %220
  %222 = vrot.lane.b32.xlu0 %v109, 96
  %v223 = vpop.permute.xlu0 %222
  %vm224 = vcmask 785408
  %v225 = vsel %vm224, %v209, %v211
  %v226 = vsel %vm224, %v211, %v213
  %v227 = vsel %vm224, %v213, %v215
  %v228 = vsel %vm224, %v215, %v217
  %v229 = vsel %vm224, %v217, %v219
  %v230 = vsel %vm224, %v219, %v221
  %v231 = vsel %vm224, %v221, %v223
  %240 = vst [vmem:[#allocation2 + $0x40] sm:$0x3f] %v225
  %241 = vst [vmem:[#allocation2 + $0x48] sm:$0x3f] %v226
  %242 = vst [vmem:[#allocation2 + $0x50] sm:$0x3f] %v227
  %243 = vst [vmem:[#allocation2 + $0x58] sm:$0x3f] %v228
  %244 = vst [vmem:[#allocation2 + $0x60] sm:$0x3f] %v229
  %245 = vst [vmem:[#allocation2 + $0x68] sm:$0x3f] %v230
  %246 = vst [vmem:[#allocation2 + $0x70] sm:$0x3f] %v231
  %247 = vst.msk [vmem:[#allocation2 + $0x78] sm:$0x3f] %vm206, %v223
  %248 = vst [vmem:[#allocation2 + $0x80] sm:$0x3f] %v102
  %249 = vst [vmem:[#allocation2 + $0x88] sm:$0x3f] %v103
  %250 = vst [vmem:[#allocation2 + $0x90] sm:$0x3f] %v104
  %251 = vst [vmem:[#allocation2 + $0x98] sm:$0x3f] %v105
  %252 = vst [vmem:[#allocation2 + $0xa0] sm:$0x3f] %v106
  %253 = vst [vmem:[#allocation2 + $0xa8] sm:$0x3f] %v107
  %254 = vst [vmem:[#allocation2 + $0xb0] sm:$0x3f] %v108
  %255 = vst.msk [vmem:[#allocation2 + $0xb8] sm:$0x3f] %vm206, %v109
  %257 = vrot.lane.b32.xlu0 %v102, 63
  %v258 = vpop.permute.xlu0 %257
  %259 = vrot.lane.b32.xlu0 %v103, 63
  %v260 = vpop.permute.xlu0 %259
  %261 = vrot.lane.b32.xlu0 %v104, 63
  %v262 = vpop.permute.xlu0 %261
  %263 = vrot.lane.b32.xlu0 %v105, 63
  %v264 = vpop.permute.xlu0 %263
  %265 = vrot.lane.b32.xlu0 %v106, 63
  %v266 = vpop.permute.xlu0 %265
  %267 = vrot.lane.b32.xlu0 %v107, 63
  %v268 = vpop.permute.xlu0 %267
  %269 = vrot.lane.b32.xlu0 %v108, 63
  %v270 = vpop.permute.xlu0 %269
  %271 = vrot.lane.b32.xlu0 %v109, 63
  %v272 = vpop.permute.xlu0 %271
  %273 = vrot.lane.b32.xlu0 %v110, 63
  %v274 = vpop.permute.xlu0 %273
  %vm275 = vcmask 515072
  %v276 = vsel %vm275, %v258, %v260
  %v277 = vsel %vm275, %v260, %v262
  %v278 = vsel %vm275, %v262, %v264
  %v279 = vsel %vm275, %v264, %v266
  %v280 = vsel %vm275, %v266, %v268
  %v281 = vsel %vm275, %v268, %v270
  %v282 = vsel %vm275, %v270, %v272
  %v283 = vsel %vm275, %v272, %v274
  %292 = vst [vmem:[#allocation2 + $0xc0] sm:$0x3f] %v276
  %293 = vst [vmem:[#allocation2 + $0xc8] sm:$0x3f] %v277
  %294 = vst [vmem:[#allocation2 + $0xd0] sm:$0x3f] %v278
  %295 = vst [vmem:[#allocation2 + $0xd8] sm:$0x3f] %v279
  %296 = vst [vmem:[#allocation2 + $0xe0] sm:$0x3f] %v280
  %297 = vst [vmem:[#allocation2 + $0xe8] sm:$0x3f] %v281
  %298 = vst [vmem:[#allocation2 + $0xf0] sm:$0x3f] %v282
  %299 = vst.msk [vmem:[#allocation2 + $0xf8] sm:$0x3f] %vm206, %v283
  %300 = vrot.lane.b32.xlu0 %v102, 95
  %v301 = vpop.permute.xlu0 %300
  %302 = vrot.lane.b32.xlu0 %v103, 95
  %v303 = vpop.permute.xlu0 %302
  %304 = vrot.lane.b32.xlu0 %v104, 95
  %v305 = vpop.permute.xlu0 %304
  %306 = vrot.lane.b32.xlu0 %v105, 95
  %v307 = vpop.permute.xlu0 %306
  %308 = vrot.lane.b32.xlu0 %v106, 95
  %v309 = vpop.permute.xlu0 %308
  %310 = vrot.lane.b32.xlu0 %v107, 95
  %v311 = vpop.permute.xlu0 %310
  %312 = vrot.lane.b32.xlu0 %v108, 95
  %v313 = vpop.permute.xlu0 %312
  %314 = vrot.lane.b32.xlu0 %v109, 95
  %v315 = vpop.permute.xlu0 %314
  %vm316 = vcmask 777216
  %v317 = vsel %vm316, %v301, %v303
  %v318 = vsel %vm316, %v303, %v305
  %v319 = vsel %vm316, %v305, %v307
  %v320 = vsel %vm316, %v307, %v309
  %v321 = vsel %vm316, %v309, %v311
  %v322 = vsel %vm316, %v311, %v313
  %v323 = vsel %vm316, %v313, %v315
  %332 = vst [vmem:[#allocation2 + $0x100] sm:$0x3f] %v317
  %333 = vst [vmem:[#allocation2 + $0x108] sm:$0x3f] %v318
  %334 = vst [vmem:[#allocation2 + $0x110] sm:$0x3f] %v319
  %335 = vst [vmem:[#allocation2 + $0x118] sm:$0x3f] %v320
  %336 = vst [vmem:[#allocation2 + $0x120] sm:$0x3f] %v321
  %337 = vst [vmem:[#allocation2 + $0x128] sm:$0x3f] %v322
  %338 = vst [vmem:[#allocation2 + $0x130] sm:$0x3f] %v323
  %339 = vst.msk [vmem:[#allocation2 + $0x138] sm:$0x3f] %vm206, %v315
  %340 = vrot.lane.b32.xlu0 %v102, 127
  %v341 = vpop.permute.xlu0 %340
  %342 = vrot.lane.b32.xlu0 %v103, 127
  %v343 = vpop.permute.xlu0 %342
  %344 = vrot.lane.b32.xlu0 %v104, 127
  %v345 = vpop.permute.xlu0 %344
  %346 = vrot.lane.b32.xlu0 %v105, 127
  %v347 = vpop.permute.xlu0 %346
  %348 = vrot.lane.b32.xlu0 %v106, 127
  %v349 = vpop.permute.xlu0 %348
  %350 = vrot.lane.b32.xlu0 %v107, 127
  %v351 = vpop.permute.xlu0 %350
  %352 = vrot.lane.b32.xlu0 %v108, 127
  %v353 = vpop.permute.xlu0 %352
  %354 = vrot.lane.b32.xlu0 %v109, 127
  %v355 = vpop.permute.xlu0 %354
  %vm356 = vcmask 1039360
  %v357 = vsel %vm356, %v341, %v343
  %v358 = vsel %vm356, %v343, %v345
  %v359 = vsel %vm356, %v345, %v347
  %v360 = vsel %vm356, %v347, %v349
  %v361 = vsel %vm356, %v349, %v351
  %v362 = vsel %vm356, %v351, %v353
  %v363 = vsel %vm356, %v353, %v355
  %372 = vst [vmem:[#allocation2 + $0x140] sm:$0x3f] %v357
  %373 = vst [vmem:[#allocation2 + $0x148] sm:$0x3f] %v358
  %374 = vst [vmem:[#allocation2 + $0x150] sm:$0x3f] %v359
  %375 = vst [vmem:[#allocation2 + $0x158] sm:$0x3f] %v360
  %376 = vst [vmem:[#allocation2 + $0x160] sm:$0x3f] %v361
  %377 = vst [vmem:[#allocation2 + $0x168] sm:$0x3f] %v362
  %378 = vst [vmem:[#allocation2 + $0x170] sm:$0x3f] %v363
  %379 = vst.msk [vmem:[#allocation2 + $0x178] sm:$0x3f] %vm206, %v355
  %v380 = vld [vmem:[%s3] sm:$0xff]
  %v381 = vld [vmem:[%s3 + $0x8] sm:$0xf]
  %v382 = vld [vmem:[#allocation2] sm:$0xff]
  %v383 = vld [vmem:[#allocation2 + $0x8] sm:$0xff]
  %v384 = vld [vmem:[#allocation2 + $0x10] sm:$0xff]
  %v385 = vld [vmem:[#allocation2 + $0x18] sm:$0xff]
  %v386 = vld [vmem:[#allocation2 + $0x20] sm:$0xff]
  %v387 = vld [vmem:[#allocation2 + $0x28] sm:$0xff]
  %v388 = vld [vmem:[#allocation2 + $0x30] sm:$0xff]
  %v389 = vld [vmem:[#allocation2 + $0x38] sm:$0xff]
  %v390 = vld [vmem:[#allocation2 + $0x40] sm:$0xff]
  %v391 = vld [vmem:[#allocation2 + $0x48] sm:$0xff]
  %v392 = vld [vmem:[#allocation2 + $0x50] sm:$0xff]
  %v393 = vld [vmem:[#allocation2 + $0x58] sm:$0xff]
  %v394 = vld [vmem:[#allocation2 + $0x60] sm:$0xff]
  %v395 = vld [vmem:[#allocation2 + $0x68] sm:$0xff]
  %v396 = vld [vmem:[#allocation2 + $0x70] sm:$0xff]
  %v397 = vld [vmem:[#allocation2 + $0x78] sm:$0xff]
  %v398 = vld [vmem:[#allocation2 + $0x80] sm:$0xff]
  %v399 = vld [vmem:[#allocation2 + $0x88] sm:$0xff]
  %v400 = vld [vmem:[#allocation2 + $0x90] sm:$0xff]
  %v401 = vld [vmem:[#allocation2 + $0x98] sm:$0xff]
  %v402 = vld [vmem:[#allocation2 + $0xa0] sm:$0xff]
  %v403 = vld [vmem:[#allocation2 + $0xa8] sm:$0xff]
  %v404 = vld [vmem:[#allocation2 + $0xb0] sm:$0xff]
  %v405 = vld [vmem:[#allocation2 + $0xb8] sm:$0xff]
  %v406 = vld [vmem:[#allocation2 + $0xc0] sm:$0xff]
  %v407 = vld [vmem:[#allocation2 + $0xc8] sm:$0xff]
  %v408 = vld [vmem:[#allocation2 + $0xd0] sm:$0xff]
  %v409 = vld [vmem:[#allocation2 + $0xd8] sm:$0xff]
  %v410 = vld [vmem:[#allocation2 + $0xe0] sm:$0xff]
  %v411 = vld [vmem:[#allocation2 + $0xe8] sm:$0xff]
  %v412 = vld [vmem:[#allocation2 + $0xf0] sm:$0xff]
  %v413 = vld [vmem:[#allocation2 + $0xf8] sm:$0xff]
  %v414 = vld [vmem:[#allocation2 + $0x100] sm:$0xff]
  %v415 = vld [vmem:[#allocation2 + $0x108] sm:$0xff]
  %v416 = vld [vmem:[#allocation2 + $0x110] sm:$0xff]
  %v417 = vld [vmem:[#allocation2 + $0x118] sm:$0xff]
  %v418 = vld [vmem:[#allocation2 + $0x120] sm:$0xff]
  %v419 = vld [vmem:[#allocation2 + $0x128] sm:$0xff]
  %v420 = vld [vmem:[#allocation2 + $0x130] sm:$0xff]
  %v421 = vld [vmem:[#allocation2 + $0x138] sm:$0xff]
  %v422 = vld [vmem:[#allocation2 + $0x140] sm:$0xff]
  %v423 = vld [vmem:[#allocation2 + $0x148] sm:$0xff]
  %v424 = vld [vmem:[#allocation2 + $0x150] sm:$0xff]
  %v425 = vld [vmem:[#allocation2 + $0x158] sm:$0xff]
  %v426 = vld [vmem:[#allocation2 + $0x160] sm:$0xff]
  %v427 = vld [vmem:[#allocation2 + $0x168] sm:$0xff]
  %v428 = vld [vmem:[#allocation2 + $0x170] sm:$0xff]
  %v429 = vld [vmem:[#allocation2 + $0x178] sm:$0xff]
  %v430 = vld [vmem:[%s4] sm:$0xff]
  %v431 = vld [vmem:[%s4 + $0x8] sm:$0xf]
  %433 = vset.pattern.permute.xlu0 0
  %434 = vperm.xlu0 %433, %v430
  %v435 = vpop.permute.xlu0 %434
  %438 = vset.pattern.permute.xlu0 0
  %439 = vperm.xlu0 %438, %v431
  %v440 = vpop.permute.xlu0 %439
  %vm442 = vcmask 392192
  %v444 = vsel %vm442, %v380, 0
  %v447 = vsel %vm442, %v381, 0
  %449 = vmatprep.subr.mxu0 %v383
  %450 = vmatpush1.msra.mxu0 %v382
  %451 = vmatprep.subr.mxu0 %v391
  %452 = vmatpush1.msra.mxu0 %v390
  %453 = vmatprep.subr.mxu0 %v399
  %454 = vmatpush1.msra.mxu0 %v398
  %455 = vmatprep.subr.mxu0 %v407
  %456 = vmatpush1.msra.mxu0 %v406
  %457 = vmatprep.subr.mxu0 %v415
  %458 = vmatpush1.msra.mxu0 %v414
  %459 = vmatprep.subr.mxu0 %v423
  %460 = vmatpush1.msra.mxu0 %v422
  %461 = vmatprep.subr.mxu0 0.0
  %462 = vmatpush1.msra.mxu0 0.0
  %463 = vmatprep.subr.mxu0 0.0
  %464 = vmatpush1.msra.mxu0 0.0
  %465 = vmatprep.subr.mxu0 0.0
  %466 = vmatpush1.msra.mxu0 0.0
  %467 = vmatprep.subr.mxu0 0.0
  %468 = vmatpush1.msra.mxu0 0.0
  %469 = vmatprep.subr.mxu0 0.0
  %470 = vmatpush1.msra.mxu0 0.0
  %471 = vmatprep.subr.mxu0 0.0
  %472 = vmatpush1.msra.mxu0 0.0
  %473 = vmatprep.subr.mxu0 0.0
  %474 = vmatpush1.msra.mxu0 0.0
  %475 = vmatprep.subr.mxu0 0.0
  %476 = vmatpush1.msra.mxu0 0.0
  %477 = vmatprep.subr.mxu0 0.0
  %478 = vmatpush1.msra.mxu0 0.0
  %479 = vmatprep.subr.mxu0 0.0
  %480 = vmatpush1.msra.mxu0 0.0
  %481 = vmatprep.subr.mxu0 0.0
  %482 = vmatpush1.msra.mxu0 0.0
  %483 = vmatprep.subr.mxu0 0.0
  %484 = vmatpush1.msra.mxu0 0.0
  %485 = vmatprep.subr.mxu0 0.0
  %486 = vmatpush1.msra.mxu0 0.0
  %487 = vmatprep.subr.mxu0 0.0
  %488 = vmatpush1.msra.mxu0 0.0
  %489 = vmatprep.subr.mxu0 0.0
  %490 = vmatpush1.msra.mxu0 0.0
  %491 = vmatprep.subr.mxu0 0.0
  %492 = vmatpush1.msra.mxu0 0.0
  %493 = vmatprep.subr.mxu0 0.0
  %494 = vmatpush1.msra.mxu0 0.0
  %495 = vmatprep.subr.mxu0 0.0
  %496 = vmatpush1.msra.mxu0 0.0
  %497 = vmatprep.subr.mxu0 0.0
  %498 = vmatpush1.msra.mxu0 0.0
  %499 = vmatprep.subr.mxu0 0.0
  %500 = vmatpush1.msra.mxu0 0.0
  %501 = vmatprep.subr.mxu0 0.0
  %502 = vmatpush1.msra.mxu0 0.0
  %503 = vmatprep.subr.mxu0 0.0
  %504 = vmatpush1.msra.mxu0 0.0
  %505 = vmatprep.subr.mxu0 0.0
  %506 = vmatpush1.msra.mxu0 0.0
  %507 = vmatprep.subr.mxu0 0.0
  %508 = vmatpush1.msra.mxu0 0.0
  %509 = vmatprep.subr.mxu0 0.0
  %510 = vmatpush1.msra.mxu0 0.0
  %511 = vmatprep.subr.mxu0 0.0
  %512 = vmatpush1.msra.mxu0 0.0
  %513 = vmatprep.mubr.f32.mxu0 0.0
  %514 = vmatmul.mubr.f32.gmra.mrb[0].mxu0 %v444
  %v515 = vpop.f32.mrb[0].mxu0
  %v516 = vadd.f32 %v435, %v515
  %v517 = vpop.f32.mrb[0].mxu0
  %v518 = vadd.f32 %v435, %v517
  %519 = vmatprep.mubr.f32.mxu0 0.0
  %520 = vmatmul.mubr.f32.gmra.mrb[0].mxu0 %v447
  %v521 = vpop.f32.mrb[0].mxu0
  %v522 = vadd.f32 %v440, %v521
  %v523 = vpop.f32.mrb[0].mxu0
  %v524 = vadd.f32 %v440, %v523
  %525 = vdwg.mxu0
  %526 = vmatprep.subr.mxu0 %v385
  %527 = vmatpush1.msra.mxu0 %v384
  %528 = vmatprep.subr.mxu0 %v393
  %529 = vmatpush1.msra.mxu0 %v392
  %530 = vmatprep.subr.mxu0 %v401
  %531 = vmatpush1.msra.mxu0 %v400
  %532 = vmatprep.subr.mxu0 %v409
  %533 = vmatpush1.msra.mxu0 %v408
  %534 = vmatprep.subr.mxu0 %v417
  %535 = vmatpush1.msra.mxu0 %v416
  %536 = vmatprep.subr.mxu0 %v425
  %537 = vmatpush1.msra.mxu0 %v424
  %538 = vmatprep.subr.mxu0 0.0
  %539 = vmatpush1.msra.mxu0 0.0
  %540 = vmatprep.subr.mxu0 0.0
  %541 = vmatpush1.msra.mxu0 0.0
  %542 = vmatprep.subr.mxu0 0.0
  %543 = vmatpush1.msra.mxu0 0.0
  %544 = vmatprep.subr.mxu0 0.0
  %545 = vmatpush1.msra.mxu0 0.0
  %546 = vmatprep.subr.mxu0 0.0
  %547 = vmatpush1.msra.mxu0 0.0
  %548 = vmatprep.subr.mxu0 0.0
  %549 = vmatpush1.msra.mxu0 0.0
  %550 = vmatprep.subr.mxu0 0.0
  %551 = vmatpush1.msra.mxu0 0.0
  %552 = vmatprep.subr.mxu0 0.0
  %553 = vmatpush1.msra.mxu0 0.0
  %554 = vmatprep.subr.mxu0 0.0
  %555 = vmatpush1.msra.mxu0 0.0
  %556 = vmatprep.subr.mxu0 0.0
  %557 = vmatpush1.msra.mxu0 0.0
  %558 = vmatprep.subr.mxu0 0.0
  %559 = vmatpush1.msra.mxu0 0.0
  %560 = vmatprep.subr.mxu0 0.0
  %561 = vmatpush1.msra.mxu0 0.0
  %562 = vmatprep.subr.mxu0 0.0
  %563 = vmatpush1.msra.mxu0 0.0
  %564 = vmatprep.subr.mxu0 0.0
  %565 = vmatpush1.msra.mxu0 0.0
  %566 = vmatprep.subr.mxu0 0.0
  %567 = vmatpush1.msra.mxu0 0.0
  %568 = vmatprep.subr.mxu0 0.0
  %569 = vmatpush1.msra.mxu0 0.0
  %570 = vmatprep.subr.mxu0 0.0
  %571 = vmatpush1.msra.mxu0 0.0
  %572 = vmatprep.subr.mxu0 0.0
  %573 = vmatpush1.msra.mxu0 0.0
  %574 = vmatprep.subr.mxu0 0.0
  %575 = vmatpush1.msra.mxu0 0.0
  %576 = vmatprep.subr.mxu0 0.0
  %577 = vmatpush1.msra.mxu0 0.0
  %578 = vmatprep.subr.mxu0 0.0
  %579 = vmatpush1.msra.mxu0 0.0
  %580 = vmatprep.subr.mxu0 0.0
  %581 = vmatpush1.msra.mxu0 0.0
  %582 = vmatprep.subr.mxu0 0.0
  %583 = vmatpush1.msra.mxu0 0.0
  %584 = vmatprep.subr.mxu0 0.0
  %585 = vmatpush1.msra.mxu0 0.0
  %586 = vmatprep.subr.mxu0 0.0
  %587 = vmatpush1.msra.mxu0 0.0
  %588 = vmatprep.subr.mxu0 0.0
  %589 = vmatpush1.msra.mxu0 0.0
  %590 = vmatprep.mubr.f32.mxu0 0.0
  %591 = vmatmul.mubr.f32.gmra.mrb[0].mxu0 %v444
  %v592 = vpop.f32.mrb[0].mxu0
  %v593 = vadd.f32 %v435, %v592
  %v594 = vpop.f32.mrb[0].mxu0
  %v595 = vadd.f32 %v435, %v594
  %596 = vmatprep.mubr.f32.mxu0 0.0
  %597 = vmatmul.mubr.f32.gmra.mrb[0].mxu0 %v447
  %v598 = vpop.f32.mrb[0].mxu0
  %v599 = vadd.f32 %v440, %v598
  %v600 = vpop.f32.mrb[0].mxu0
  %v601 = vadd.f32 %v440, %v600
  %602 = vdwg.mxu0
  %603 = vmatprep.subr.mxu0 %v387
  %604 = vmatpush1.msra.mxu0 %v386
  %605 = vmatprep.subr.mxu0 %v395
  %606 = vmatpush1.msra.mxu0 %v394
  %607 = vmatprep.subr.mxu0 %v403
  %608 = vmatpush1.msra.mxu0 %v402
  %609 = vmatprep.subr.mxu0 %v411
  %610 = vmatpush1.msra.mxu0 %v410
  %611 = vmatprep.subr.mxu0 %v419
  %612 = vmatpush1.msra.mxu0 %v418
  %613 = vmatprep.subr.mxu0 %v427
  %614 = vmatpush1.msra.mxu0 %v426
  %615 = vmatprep.subr.mxu0 0.0
  %616 = vmatpush1.msra.mxu0 0.0
  %617 = vmatprep.subr.mxu0 0.0
  %618 = vmatpush1.msra.mxu0 0.0
  %619 = vmatprep.subr.mxu0 0.0
  %620 = vmatpush1.msra.mxu0 0.0
  %621 = vmatprep.subr.mxu0 0.0
  %622 = vmatpush1.msra.mxu0 0.0
  %623 = vmatprep.subr.mxu0 0.0
  %624 = vmatpush1.msra.mxu0 0.0
  %625 = vmatprep.subr.mxu0 0.0
  %626 = vmatpush1.msra.mxu0 0.0
  %627 = vmatprep.subr.mxu0 0.0
  %628 = vmatpush1.msra.mxu0 0.0
  %629 = vmatprep.subr.mxu0 0.0
  %630 = vmatpush1.msra.mxu0 0.0
  %631 = vmatprep.subr.mxu0 0.0
  %632 = vmatpush1.msra.mxu0 0.0
  %633 = vmatprep.subr.mxu0 0.0
  %634 = vmatpush1.msra.mxu0 0.0
  %635 = vmatprep.subr.mxu0 0.0
  %636 = vmatpush1.msra.mxu0 0.0
  %637 = vmatprep.subr.mxu0 0.0
  %638 = vmatpush1.msra.mxu0 0.0
  %639 = vmatprep.subr.mxu0 0.0
  %640 = vmatpush1.msra.mxu0 0.0
  %641 = vmatprep.subr.mxu0 0.0
  %642 = vmatpush1.msra.mxu0 0.0
  %643 = vmatprep.subr.mxu0 0.0
  %644 = vmatpush1.msra.mxu0 0.0
  %645 = vmatprep.subr.mxu0 0.0
  %646 = vmatpush1.msra.mxu0 0.0
  %647 = vmatprep.subr.mxu0 0.0
  %648 = vmatpush1.msra.mxu0 0.0
  %649 = vmatprep.subr.mxu0 0.0
  %650 = vmatpush1.msra.mxu0 0.0
  %651 = vmatprep.subr.mxu0 0.0
  %652 = vmatpush1.msra.mxu0 0.0
  %653 = vmatprep.subr.mxu0 0.0
  %654 = vmatpush1.msra.mxu0 0.0
  %655 = vmatprep.subr.mxu0 0.0
  %656 = vmatpush1.msra.mxu0 0.0
  %657 = vmatprep.subr.mxu0 0.0
  %658 = vmatpush1.msra.mxu0 0.0
  %659 = vmatprep.subr.mxu0 0.0
  %660 = vmatpush1.msra.mxu0 0.0
  %661 = vmatprep.subr.mxu0 0.0
  %662 = vmatpush1.msra.mxu0 0.0
  %663 = vmatprep.subr.mxu0 0.0
  %664 = vmatpush1.msra.mxu0 0.0
  %665 = vmatprep.subr.mxu0 0.0
  %666 = vmatpush1.msra.mxu0 0.0
  %667 = vmatprep.mubr.f32.mxu0 0.0
  %668 = vmatmul.mubr.f32.gmra.mrb[0].mxu0 %v444
  %v669 = vpop.f32.mrb[0].mxu0
  %v670 = vadd.f32 %v435, %v669
  %v671 = vpop.f32.mrb[0].mxu0
  %v672 = vadd.f32 %v435, %v671
  %673 = vmatprep.mubr.f32.mxu0 0.0
  %674 = vmatmul.mubr.f32.gmra.mrb[0].mxu0 %v447
  %v675 = vpop.f32.mrb[0].mxu0
  %v676 = vadd.f32 %v440, %v675
  %v677 = vpop.f32.mrb[0].mxu0
  %v678 = vadd.f32 %v440, %v677
  %679 = vdwg.mxu0
  %680 = vmatprep.subr.mxu0 %v389
  %681 = vmatpush1.msra.mxu0 %v388
  %682 = vmatprep.subr.mxu0 %v397
  %683 = vmatpush1.msra.mxu0 %v396
  %684 = vmatprep.subr.mxu0 %v405
  %685 = vmatpush1.msra.mxu0 %v404
  %686 = vmatprep.subr.mxu0 %v413
  %687 = vmatpush1.msra.mxu0 %v412
  %688 = vmatprep.subr.mxu0 %v421
  %689 = vmatpush1.msra.mxu0 %v420
  %690 = vmatprep.subr.mxu0 %v429
  %691 = vmatpush1.msra.mxu0 %v428
  %692 = vmatprep.subr.mxu0 0.0
  %693 = vmatpush1.msra.mxu0 0.0
  %694 = vmatprep.subr.mxu0 0.0
  %695 = vmatpush1.msra.mxu0 0.0
  %696 = vmatprep.subr.mxu0 0.0
  %697 = vmatpush1.msra.mxu0 0.0
  %698 = vmatprep.subr.mxu0 0.0
  %699 = vmatpush1.msra.mxu0 0.0
  %700 = vmatprep.subr.mxu0 0.0
  %701 = vmatpush1.msra.mxu0 0.0
  %702 = vmatprep.subr.mxu0 0.0
  %703 = vmatpush1.msra.mxu0 0.0
  %704 = vmatprep.subr.mxu0 0.0
  %705 = vmatpush1.msra.mxu0 0.0
  %706 = vmatprep.subr.mxu0 0.0
  %707 = vmatpush1.msra.mxu0 0.0
  %708 = vmatprep.subr.mxu0 0.0
  %709 = vmatpush1.msra.mxu0 0.0
  %710 = vmatprep.subr.mxu0 0.0
  %711 = vmatpush1.msra.mxu0 0.0
  %712 = vmatprep.subr.mxu0 0.0
  %713 = vmatpush1.msra.mxu0 0.0
  %714 = vmatprep.subr.mxu0 0.0
  %715 = vmatpush1.msra.mxu0 0.0
  %716 = vmatprep.subr.mxu0 0.0
  %717 = vmatpush1.msra.mxu0 0.0
  %718 = vmatprep.subr.mxu0 0.0
  %719 = vmatpush1.msra.mxu0 0.0
  %720 = vmatprep.subr.mxu0 0.0
  %721 = vmatpush1.msra.mxu0 0.0
  %722 = vmatprep.subr.mxu0 0.0
  %723 = vmatpush1.msra.mxu0 0.0
  %724 = vmatprep.subr.mxu0 0.0
  %725 = vmatpush1.msra.mxu0 0.0
  %726 = vmatprep.subr.mxu0 0.0
  %727 = vmatpush1.msra.mxu0 0.0
  %728 = vmatprep.subr.mxu0 0.0
  %729 = vmatpush1.msra.mxu0 0.0
  %730 = vmatprep.subr.mxu0 0.0
  %731 = vmatpush1.msra.mxu0 0.0
  %732 = vmatprep.subr.mxu0 0.0
  %733 = vmatpush1.msra.mxu0 0.0
  %734 = vmatprep.subr.mxu0 0.0
  %735 = vmatpush1.msra.mxu0 0.0
  %736 = vmatprep.subr.mxu0 0.0
  %737 = vmatpush1.msra.mxu0 0.0
  %738 = vmatprep.subr.mxu0 0.0
  %739 = vmatpush1.msra.mxu0 0.0
  %740 = vmatprep.subr.mxu0 0.0
  %741 = vmatpush1.msra.mxu0 0.0
  %742 = vmatprep.subr.mxu0 0.0
  %743 = vmatpush1.msra.mxu0 0.0
  %744 = vmatprep.mubr.f32.mxu0 0.0
  %745 = vmatmul.mubr.f32.gmra.mrb[0].mxu0 %v444
  %v746 = vpop.f32.mrb[0].mxu0
  %v747 = vadd.f32 %v435, %v746
  %v748 = vpop.f32.mrb[0].mxu0
  %v749 = vadd.f32 %v435, %v748
  %750 = vmatprep.mubr.f32.mxu0 0.0
  %751 = vmatmul.mubr.f32.gmra.mrb[0].mxu0 %v447
  %v752 = vpop.f32.mrb[0].mxu0
  %v753 = vadd.f32 %v440, %v752
  %v754 = vpop.f32.mrb[0].mxu0
  %v755 = vadd.f32 %v440, %v754
  %756 = vdwg.mxu0
  %v757 = vxor.u32 %v516, 2147483648
  %v758 = vxor.u32 %v518, 2147483648
  %v759 = vxor.u32 %v593, 2147483648
  %v760 = vxor.u32 %v595, 2147483648
  %v761 = vxor.u32 %v670, 2147483648
  %v762 = vxor.u32 %v672, 2147483648
  %v763 = vxor.u32 %v747, 2147483648
  %v764 = vxor.u32 %v749, 2147483648
  %v765 = vxor.u32 %v522, 2147483648
  %v766 = vxor.u32 %v524, 2147483648
  %v767 = vxor.u32 %v599, 2147483648
  %v768 = vxor.u32 %v601, 2147483648
  %v769 = vxor.u32 %v676, 2147483648
  %v770 = vxor.u32 %v678, 2147483648
  %v771 = vxor.u32 %v753, 2147483648
  %v772 = vxor.u32 %v755, 2147483648
  %v773 = vmul.f32 %v757, 1.442695
  %v774 = vpow.pop %v773
  %v775 = vmul.f32 %v758, 1.442695
  %v776 = vpow.pop %v775
  %v777 = vmul.f32 %v759, 1.442695
  %v778 = vpow.pop %v777
  %v779 = vmul.f32 %v760, 1.442695
  %v780 = vpow.pop %v779
  %v781 = vmul.f32 %v761, 1.442695
  %v782 = vpow.pop %v781
  %v783 = vmul.f32 %v762, 1.442695
  %v784 = vpow.pop %v783
  %v785 = vmul.f32 %v763, 1.442695
  %v786 = vpow.pop %v785
  %v787 = vmul.f32 %v764, 1.442695
  %v788 = vpow.pop %v787
  %v789 = vmul.f32 %v765, 1.442695
  %v790 = vpow.pop %v789
  %v791 = vmul.f32 %v766, 1.442695
  %v792 = vpow.pop %v791
  %v793 = vmul.f32 %v767, 1.442695
  %v794 = vpow.pop %v793
  %v795 = vmul.f32 %v768, 1.442695
  %v796 = vpow.pop %v795
  %v797 = vmul.f32 %v769, 1.442695
  %v798 = vpow.pop %v797
  %v799 = vmul.f32 %v770, 1.442695
  %v800 = vpow.pop %v799
  %v801 = vmul.f32 %v771, 1.442695
  %v802 = vpow.pop %v801
  %v803 = vmul.f32 %v772, 1.442695
  %v804 = vpow.pop %v803
  %v805 = vadd.f32 %v774, 1.0
  %v806 = vadd.f32 %v776, 1.0
  %v807 = vadd.f32 %v778, 1.0
  %v808 = vadd.f32 %v780, 1.0
  %v809 = vadd.f32 %v782, 1.0
  %v810 = vadd.f32 %v784, 1.0
  %v811 = vadd.f32 %v786, 1.0
  %v812 = vadd.f32 %v788, 1.0
  %v813 = vadd.f32 %v790, 1.0
  %v814 = vadd.f32 %v792, 1.0
  %v815 = vadd.f32 %v794, 1.0
  %v816 = vadd.f32 %v796, 1.0
  %v817 = vadd.f32 %v798, 1.0
  %v818 = vadd.f32 %v800, 1.0
  %v819 = vadd.f32 %v802, 1.0
  %v820 = vadd.f32 %v804, 1.0
  %v821 = vrcp.pop %v805
  %v822 = vmul.f32 1.0, %v821
  %v823 = vrcp.pop %v806
  %v824 = vmul.f32 1.0, %v823
  %v825 = vrcp.pop %v807
  %v826 = vmul.f32 1.0, %v825
  %v827 = vrcp.pop %v808
  %v828 = vmul.f32 1.0, %v827
  %v829 = vrcp.pop %v809
  %v830 = vmul.f32 1.0, %v829
  %v831 = vrcp.pop %v810
  %v832 = vmul.f32 1.0, %v831
  %v833 = vrcp.pop %v811
  %v834 = vmul.f32 1.0, %v833
  %v835 = vrcp.pop %v812
  %v836 = vmul.f32 1.0, %v835
  %v837 = vrcp.pop %v813
  %v838 = vmul.f32 1.0, %v837
  %v839 = vrcp.pop %v814
  %v840 = vmul.f32 1.0, %v839
  %v841 = vrcp.pop %v815
  %v842 = vmul.f32 1.0, %v841
  %v843 = vrcp.pop %v816
  %v844 = vmul.f32 1.0, %v843
  %v845 = vrcp.pop %v817
  %v846 = vmul.f32 1.0, %v845
  %v847 = vrcp.pop %v818
  %v848 = vmul.f32 1.0, %v847
  %v849 = vrcp.pop %v819
  %v850 = vmul.f32 1.0, %v849
  %v851 = vrcp.pop %v820
  %v852 = vmul.f32 1.0, %v851
  %853 = vst [vmem:[%s5] sm:$0xff] %v822
  %854 = vst [vmem:[%s5 + $0x8] sm:$0xff] %v824
  %855 = vst [vmem:[%s5 + $0x10] sm:$0xff] %v826
  %856 = vst [vmem:[%s5 + $0x18] sm:$0xff] %v828
  %857 = vst [vmem:[%s5 + $0x20] sm:$0xff] %v830
  %858 = vst [vmem:[%s5 + $0x28] sm:$0xff] %v832
  %859 = vst [vmem:[%s5 + $0x30] sm:$0xff] %v834
  %860 = vst.msk [vmem:[%s5 + $0x38] sm:$0xff] %vm118, %v836
  %861 = vst [vmem:[%s5 + $0x40] sm:$0xf] %v838
  %862 = vst [vmem:[%s5 + $0x48] sm:$0xf] %v840
  %863 = vst [vmem:[%s5 + $0x50] sm:$0xf] %v842
  %864 = vst [vmem:[%s5 + $0x58] sm:$0xf] %v844
  %865 = vst [vmem:[%s5 + $0x60] sm:$0xf] %v846
  %866 = vst [vmem:[%s5 + $0x68] sm:$0xf] %v848
  %867 = vst [vmem:[%s5 + $0x70] sm:$0xf] %v850
  %vm868 = vcmask 519168
  %869 = vst.msk [vmem:[%s5 + $0x78] sm:$0xf] %vm868, %v852
  // Predicated region
  $region22: #{model_forward.1} parent=0 // pred_check
    _
  $region23: #{model_forward.1} parent=0 // pred_check_branch
    %871 = sbr.rel (0) target = $region25
  $region24: #{model_forward.1} parent=0 // pred_region
    _
  $region25: #{model_forward.1} parent=0 // pred_fallthru
    _
  // Predicated region
  $region26: #{model_forward.1} parent=0 // pred_check
    _
  $region27: #{model_forward.1} parent=0 // pred_check_branch
    %873 = sbr.rel (0) target = $region29
  $region28: #{model_forward.1} parent=0 // pred_region
    _
  $region29: #{model_forward.1} parent=0 // pred_fallthru
    _

</llo_original>
